<compile_context>
chip_gen: v7x
topology: tpu7x:2x2x1
jax: 0.10.0
libtpu: 0.0.40
codegen_flags: <defaults>
</compile_context>

<pallas_src>
import numpy as np

import jax
import jax.numpy as jnp
from jax.experimental import pallas as pl
from jax.experimental.pallas import tpu as pltpu

_LANE = 128
_SUBLANE = 8
_MAX_TM = 1024          # cap on packed rows per grid step (~0.5-4 MiB out tile)
_MIN_TM = 64            # don't shrink tiles below this just to add grid steps
_MIN_STEPS = 8          # target >= 8 grid steps (>= 4 per TensorCore on v7x)
_VMEM_TILE_BUDGET = 12 * 2**20   # budget for the double-buffered tiles


def _round_up(v: int, m: int) -> int:
    return ((v + m - 1) // m) * m


def _finish(t, tab_ref, out_ref, exact_cos):
    # t: (TM, W) = x * mult_term, already lane-expanded and scaled.
    if exact_cos:
        sel = tab_ref[2:3, :]                          # 1.0 on cos lanes
        out = jnp.where(sel > 0.5, jnp.cos(t), jnp.sin(t))
    else:
        out = jnp.sin(t + tab_ref[1:2, :])             # cos(t) == sin(t + pi/2)
    out_ref[...] = out.astype(out_ref.dtype)


def _make_kernel(pk: int, exact_cos: bool):
    if pk > 1:
        def kernel(x_ref, tab_ref, e_ref, out_ref):
            # x_ref: (TM, pk)   positions packed pk-per-row
            # tab_ref: (3, W)   row0 = tiled mult_term, row1 = phase, row2 = cos-select
            # e_ref: (pk, W)    one-hot lane-expansion matrix, E[p, j] = (j//out_size == p)
            # out_ref: (TM, W)  lane-dense packed output
            xe = jnp.dot(x_ref[...], e_ref[...],
                         precision=jax.lax.Precision.HIGHEST,
                         preferred_element_type=jnp.float32)
            _finish(xe * tab_ref[0:1, :], tab_ref, out_ref, exact_cos)
    else:
        def kernel(x_ref, tab_ref, out_ref):
            # pk == 1 (out_size >= 128): plain lane-broadcast, no expansion needed.
            _finish(x_ref[...] * tab_ref[0:1, :], tab_ref, out_ref, exact_cos)
    return kernel


def _choose_tile_rows(rows: int, w: int, pk: int) -> int:
    """Packed rows per grid step: VMEM budget, 1024-row cap, >= 8 grid steps."""
    # Double-buffered (TM, pk) input + (TM, W) output tiles, lane-padded.
    bytes_per_row = 2 * 4 * (_round_up(pk, _LANE) + _round_up(w, _LANE))
    tm = (_VMEM_TILE_BUDGET // bytes_per_row) // _SUBLANE * _SUBLANE
    tm = max(_SUBLANE, min(tm, _MAX_TM))
    rows8 = _round_up(max(rows, 1), _SUBLANE)
    # Aim for >= _MIN_STEPS grid steps (pipelining + v7x dual-core balance),
    # but never shrink the tile below _MIN_TM rows to get them.
    steps_tm = _round_up(-(-rows8 // _MIN_STEPS), _SUBLANE)
    tm = min(tm, max(steps_tm, _MIN_TM))
    return min(tm, rows8)


def positional_encoding(x: jax.Array, out_size: int, *,
                        exact_cos: bool = False,
                        out_dtype=jnp.float32) -> jax.Array:
    """Pallas implementation of torch_frame PositionalEncoding.forward."""
    if out_size % 2 != 0:
        raise ValueError(f"out_size should be divisible by 2 (got {out_size}).")
    half = out_size // 2
    pk = max(1, _LANE // out_size)      # positions packed per 128-lane output row
    w = pk * out_size

    # Buffer init exactly as in the module __init__.
    mult_term = jnp.power(
        jnp.float32(1.0 / 10000.0),
        jnp.arange(0, out_size, 2, dtype=jnp.float32) / jnp.float32(out_size),
    )                                                                     # (half,)
    mt_seg = jnp.concatenate([mult_term, mult_term])                      # (out_size,)
    ph_seg = jnp.concatenate([jnp.zeros((half,), jnp.float32),
                              jnp.full((half,), jnp.float32(np.pi / 2.0))])
    sel_seg = jnp.concatenate([jnp.zeros((half,), jnp.float32),
                               jnp.ones((half,), jnp.float32)])
    tab = jnp.stack([jnp.tile(mt_seg, pk),
                     jnp.tile(ph_seg, pk),
                     jnp.tile(sel_seg, pk)], axis=0)                      # (3, W)

    # TODO(synk): the PyTorch forward asserts all(input >= 0); a runtime assert on
    # traced values has no clean Pallas equivalent (pl.debug_check in interpret
    # mode can be used for testing).

    orig_shape = x.shape
    m = int(np.prod(orig_shape))
    if m == 0:
        return jnp.zeros(orig_shape + (out_size,), out_dtype)

    rows = -(-m // pk)                              # packed rows needed
    tm = _choose_tile_rows(rows, w, pk)
    rows_pad = _round_up(rows, tm)

    x_flat = jnp.reshape(x, (m,)).astype(jnp.float32)
    if rows_pad * pk > m:
        x_flat = jnp.pad(x_flat, (0, rows_pad * pk - m))
    x2d = x_flat.reshape(rows_pad, pk)

    in_specs = [pl.BlockSpec((tm, pk), lambda i: (i, 0)),
                pl.BlockSpec((3, w), lambda i: (0, 0))]
    operands = [x2d, tab]
    if pk > 1:
        # One-hot lane-expansion matrix: E[p, j] = 1.0 iff j // out_size == p.
        expand = jnp.repeat(jnp.eye(pk, dtype=jnp.float32), out_size, axis=1)  # (pk, W)
        in_specs.append(pl.BlockSpec((pk, w), lambda i: (0, 0)))
        operands.append(expand)

    # Modest scoped-VMEM request: comfortably above the working set, well under
    # v7x's 64 MiB physical VMEM (and >= nothing we actually need on v5e/v6e).
    est_vmem = (2 * 4 * tm * (_round_up(pk, _LANE) + _round_up(w, _LANE))
                + 4 * 4 * _SUBLANE * _round_up(w, _LANE))
    vmem_limit = int(min(32 * 2**20, est_vmem + 16 * 2**20))

    out2d = pl.pallas_call(
        _make_kernel(pk, exact_cos),
        out_shape=jax.ShapeDtypeStruct((rows_pad, w), out_dtype),
        grid=(rows_pad // tm,),
        in_specs=in_specs,
        out_specs=pl.BlockSpec((tm, w), lambda i: (i, 0)),
        compiler_params=pltpu.CompilerParams(
            dimension_semantics=("parallel",),
            vmem_limit_bytes=vmem_limit),
    )(*operands)

    # Pure metadata reshape: (rows_pad, pk*out_size) -> (rows_pad*pk, out_size).
    out = out2d.reshape(rows_pad * pk, out_size)
    if rows_pad * pk > m:
        out = out[:m]
    return out.reshape(orig_shape + (out_size,))


def _reference(x: jax.Array, out_size: int) -> jax.Array:
    half = out_size // 2
    mult_term = jnp.power(
        jnp.float32(1.0 / 10000.0),
        jnp.arange(0, out_size, 2, dtype=jnp.float32) / jnp.float32(out_size),
    )
    mult = x.astype(jnp.float32)[..., None] * mult_term.reshape(
        (1,) * x.ndim + (half,))
    return jnp.concatenate([jnp.sin(mult), jnp.cos(mult)], axis=-1)


if __name__ == "__main__":
    key = jax.random.PRNGKey(0)
    out_size = 32
    # Non-negative "positions"; output becomes (2, 4, 16, 16, out_size).
    x = jax.random.uniform(key, (2, 4, 16, 16), dtype=jnp.float32) * 100.0

    ref = _reference(x, out_size)

    # Default (fast) path: single sin per element via cos(t) = sin(t + pi/2).
    out = jax.block_until_ready(positional_encoding(x, out_size))
    assert out.shape == x.shape + (out_size,), out.shape
    # atol absorbs the f32-rounded pi/2 phase (error ~1e-7 * |t|, |t| <= ~100).
    np.testing.assert_allclose(np.asarray(out), np.asarray(ref), rtol=1e-5, atol=2e-5)

    # Exact path: full-width sin + cos + lane-select (faithful to the formula).
    out_exact = jax.block_until_ready(
        positional_encoding(x, out_size, exact_cos=True))
    np.testing.assert_allclose(np.asarray(out_exact), np.asarray(ref),
                               rtol=1e-5, atol=1e-5)

    print("KERNEL_OK")
</pallas_src>

<mosaic_0001>
module attributes {stable_mosaic.version = 11 : i64} {
  func.func @kernel(%arg0: i32, %arg1: memref<64x4xf32, #tpu.memory_space<vmem>>, %arg2: memref<3x128xf32, #tpu.memory_space<vmem>>, %arg3: memref<4x128xf32, #tpu.memory_space<vmem>>, %arg4: memref<64x128xf32, #tpu.memory_space<vmem>>) attributes {dimension_semantics = [#tpu.dimension_semantics<parallel>], iteration_bounds = array<i64: 8>, scalar_prefetch = 0 : i64, scratch_operands = 0 : i64, tpu.core_type = #tpu.core_type<tc>, window_params = [{transform_indices = @transform_0, window_bounds = array<i64: 64, 4>}, {pipeline_mode = #tpu.pipeline_mode<synchronous>, transform_indices = @transform_1, window_bounds = array<i64: 3, 128>}, {pipeline_mode = #tpu.pipeline_mode<synchronous>, transform_indices = @transform_2, window_bounds = array<i64: 4, 128>}, {transform_indices = @transform_3, window_bounds = array<i64: 64, 128>}]} {
    %c0 = arith.constant 0 : index
    %c0_0 = arith.constant 0 : index
    %0 = vector.load %arg1[%c0, %c0_0] : memref<64x4xf32, #tpu.memory_space<vmem>>, vector<64x4xf32>
    %c0_1 = arith.constant 0 : index
    %c0_2 = arith.constant 0 : index
    %1 = vector.load %arg3[%c0_1, %c0_2] : memref<4x128xf32, #tpu.memory_space<vmem>>, vector<4x128xf32>
    %cst = arith.constant dense<0.000000e+00> : vector<64x128xf32>
    %2 = tpu.matmul %0, %1, %cst {dimension_numbers = #tpu.dot_dimension_numbers<[1], [0], [0], [1], [0, 0, 1, 1], [], []>, precision = #tpu.contract_precision<fp32>} : vector<64x4xf32>, vector<4x128xf32>, vector<64x128xf32> -> vector<64x128xf32>
    %c0_3 = arith.constant 0 : index
    %c0_4 = arith.constant 0 : index
    %3 = vector.load %arg2[%c0_3, %c0_4] : memref<3x128xf32, #tpu.memory_space<vmem>>, vector<1x128xf32>
    %4 = vector.broadcast %3 : vector<1x128xf32> to vector<64x128xf32>
    %5 = arith.mulf %2, %4 : vector<64x128xf32>
    %c1 = arith.constant 1 : index
    %c0_5 = arith.constant 0 : index
    %6 = vector.load %arg2[%c1, %c0_5] : memref<3x128xf32, #tpu.memory_space<vmem>>, vector<1x128xf32>
    %7 = vector.broadcast %6 : vector<1x128xf32> to vector<64x128xf32>
    %8 = arith.addf %5, %7 : vector<64x128xf32>
    %9 = math.sin %8 : vector<64x128xf32>
    %c0_6 = arith.constant 0 : index
    %c0_7 = arith.constant 0 : index
    %10 = vector.load %arg4[%c0_6, %c0_7] : memref<64x128xf32, #tpu.memory_space<vmem>>, vector<64x128xf32>
    tpu.vector_store %arg4[%c0_6, %c0_7], %9 {strides = array<i32>} : memref<64x128xf32, #tpu.memory_space<vmem>>, vector<64x128xf32>,
    return
  }
  func.func @transform_0(%arg0: i32) -> (i32, i32) {
    %c0_i32 = arith.constant 0 : i32
    %c0_i32_0 = arith.constant 0 : i32
    return %arg0, %c0_i32 : i32, i32
  }
  func.func @transform_1(%arg0: i32) -> (i32, i32) {
    %c0_i32 = arith.constant 0 : i32
    %c0_i32_0 = arith.constant 0 : i32
    %c0_i32_1 = arith.constant 0 : i32
    return %c0_i32, %c0_i32_0 : i32, i32
  }
  func.func @transform_2(%arg0: i32) -> (i32, i32) {
    %c0_i32 = arith.constant 0 : i32
    %c0_i32_0 = arith.constant 0 : i32
    %c0_i32_1 = arith.constant 0 : i32
    return %c0_i32, %c0_i32_0 : i32, i32
  }
  func.func @transform_3(%arg0: i32) -> (i32, i32) {
    %c0_i32 = arith.constant 0 : i32
    %c0_i32_0 = arith.constant 0 : i32
    return %arg0, %c0_i32 : i32, i32
  }
}

</mosaic_0001>

<llo_original>
// kernel: tpu_custom_call.1
$region0: #{tpu_custom_call.1}
  #allocation0 [shape = 'u32[]', space=smem, size = 0x4, offset = 0x4, fixed_abs, tag = 'smem constant byte address 0x4 - core index']
  #allocation1 [shape = 'u32[144,128]{1,0:T(1,128)}', space=vmem, size = 0x12000, scoped, tag = 'internal scratch']
  %s0 = inlined_call_operand.vmem [shape: f32[512,4], index: 0, kind: input, shape index: {}]
  %s1 = inlined_call_operand.vmem [shape: f32[3,128], index: 1, kind: input, shape index: {}]
  %s2 = inlined_call_operand.vmem [shape: f32[4,128], index: 2, kind: input, shape index: {}]
  %s3 = inlined_call_operand.hbm [shape: f32[512,128], index: 3, kind: output, shape index: {}]
  %s4 = sld [smem:[#allocation0]]
  $region45: #{tpu_custom_call.1} parent=0
    _
  %s6 = ssub.s32 1, %s4
  %s7 = scalar_select 0, %s6, %s4
  $region1: #{tpu_custom_call.1} parent=0
    #allocation2 [shape = 'u8[65536]{0}', space=vmem, size = 0x10000, scoped, tag = 'output window, operand 0']
    #allocation3 [shape = 's32[2]{0}', space=sflag, size = 0x8, scoped, tag = 'scoped memory for tpu_custom_call.1']
    %8 = vsyncpa [#allocation3], 0
    %s9 = scalar_lea.sflag [#allocation3], 1
    %10 = vsyncpa %s9, 0
    loop: start=0, step=1, limit=10
    $region2: #{tpu_custom_call.1} parent=1 // loop_pre_header
      _
    $region3: #{tpu_custom_call.1} parent=1 // loop_header
      %s12 = sphi 0, %s16
      %p13 = scmp.ge.s32.totalorder %s12, 10
      %s22 = sphi 0, %s24
      %s25 = sphi 0, %s22
      %s26 = sphi 0, %s25
      %s42 = sphi 0, %s26
      %s46 = sphi 0, %s46
      %s48 = sphi 0, %s46
      %s49 = sphi 0, %s48
      %s63 = sphi 0, %s49
      %s67 = sphi 0, %s67
      %s69 = sphi 0, %s67
      %s70 = sphi 0, %s69
      %s84 = sphi 0, %s70
      %s90 = sphi 0, %s92
      %s93 = sphi 0, %s90
      %s94 = sphi 0, %s93
      %s110 = sphi 0, %s94
    $region4: #{tpu_custom_call.1} parent=1 // loop_header_branch
      %15 = sbr.rel (%p13) target = $region8
    $region5: #{tpu_custom_call.1} parent=1 // loop_body
      %s17 = ssub.s32 %s12, 1
      %s18 = ssub.s32 %s12, 2
      %s19 = sadd.s32 %s12, 1
      %s20 = ssub.s32 %s12, %s19
      %p21 = scmp.eq.s32.totalorder %s20, 0
      %s23 = sadd.s32 %s22, 1
      %s24 = scalar_select %p21, %s22, %s23
      %p27 = pneg %p21
      %p28 = scmp.eq.s32.totalorder %s12, 7
      %p29 = por %p27, %p28
      %p30 = scmp.ne.s32.totalorder %s22, %s25
      %p31 = scmp.eq.s32.totalorder %s12, 0
      %p32 = por %p30, %p31
      %p33 = scmp.ne.s32.totalorder %s22, %s25
      %p34 = scmp.eq.s32.totalorder %s17, 7
      %p35 = por %p33, %p34
      %p36 = scmp.ne.s32.totalorder %s25, %s26
      %p37 = scmp.eq.s32.totalorder %s17, 0
      %p38 = por %p36, %p37
      %p39 = scmp.ne.s32.totalorder %s25, %s26
      %p40 = scmp.eq.s32.totalorder %s18, 7
      %p41 = por %p39, %p40
      %p43 = scmp.ne.s32.totalorder %s26, %s42
      %p44 = scmp.eq.s32.totalorder %s18, 0
      %p45 = por %p43, %p44
      %s47 = sadd.s32 %s46, 1
      %p50 = scmp.eq.s32.totalorder %s12, 7
      %p51 = scmp.ne.s32.totalorder %s46, %s48
      %p52 = scmp.eq.s32.totalorder %s12, 0
      %p53 = por %p51, %p52
      %p54 = scmp.ne.s32.totalorder %s46, %s48
      %p55 = scmp.eq.s32.totalorder %s17, 7
      %p56 = por %p54, %p55
      %p57 = scmp.ne.s32.totalorder %s48, %s49
      %p58 = scmp.eq.s32.totalorder %s17, 0
      %p59 = por %p57, %p58
      %p60 = scmp.ne.s32.totalorder %s48, %s49
      %p61 = scmp.eq.s32.totalorder %s18, 7
      %p62 = por %p60, %p61
      %p64 = scmp.ne.s32.totalorder %s49, %s63
      %p65 = scmp.eq.s32.totalorder %s18, 0
      %p66 = por %p64, %p65
      %s68 = sadd.s32 %s67, 1
      %p71 = scmp.eq.s32.totalorder %s12, 7
      %p72 = scmp.ne.s32.totalorder %s67, %s69
      %p73 = scmp.eq.s32.totalorder %s12, 0
      %p74 = por %p72, %p73
      %p75 = scmp.ne.s32.totalorder %s67, %s69
      %p76 = scmp.eq.s32.totalorder %s17, 7
      %p77 = por %p75, %p76
      %p78 = scmp.ne.s32.totalorder %s69, %s70
      %p79 = scmp.eq.s32.totalorder %s17, 0
      %p80 = por %p78, %p79
      %p81 = scmp.ne.s32.totalorder %s69, %s70
      %p82 = scmp.eq.s32.totalorder %s18, 7
      %p83 = por %p81, %p82
      %p85 = scmp.ne.s32.totalorder %s70, %s84
      %p86 = scmp.eq.s32.totalorder %s18, 0
      %p87 = por %p85, %p86
      %s88 = ssub.s32 %s12, %s19
      %p89 = scmp.eq.s32.totalorder %s88, 0
      %s91 = sadd.s32 %s90, 1
      %s92 = scalar_select %p89, %s90, %s91
      %p95 = pneg %p89
      %p96 = scmp.eq.s32.totalorder %s12, 7
      %p97 = por %p95, %p96
      %p98 = scmp.ne.s32.totalorder %s90, %s93
      %p99 = scmp.eq.s32.totalorder %s12, 0
      %p100 = por %p98, %p99
      %p101 = scmp.ne.s32.totalorder %s90, %s93
      %p102 = scmp.eq.s32.totalorder %s17, 7
      %p103 = por %p101, %p102
      %p104 = scmp.ne.s32.totalorder %s93, %s94
      %p105 = scmp.eq.s32.totalorder %s17, 0
      %p106 = por %p104, %p105
      %p107 = scmp.ne.s32.totalorder %s93, %s94
      %p108 = scmp.eq.s32.totalorder %s18, 7
      %p109 = por %p107, %p108
      %p111 = scmp.ne.s32.totalorder %s94, %s110
      %p112 = scmp.eq.s32.totalorder %s18, 0
      %p113 = por %p111, %p112
      %p114 = scmp.le.s32.totalorder 1, %s12
      %p115 = scmp.lt.s32.totalorder %s12, 9
      %p116 = pnand %p114, %p115
      %p117 = pneg %p116
      // Predicated region
      $region9: #{tpu_custom_call.1} parent=5 // pred_check
        _
      $region10: #{tpu_custom_call.1} parent=5 // pred_check_branch
        %119 = sbr.rel (%p116) target = $region12
      $region11: #{tpu_custom_call.1} parent=5 // pred_region
        %s120 = ssub.s32 %s12, 1
        // Predicated region
        $region13: #{tpu_custom_call.1} parent=11 // pred_check
          %p121 = pneg %p59
        $region14: #{tpu_custom_call.1} parent=11 // pred_check_branch
          %123 = sbr.rel (%p121) target = $region16
        $region15: #{tpu_custom_call.1} parent=11 // pred_region
          _
        $region16: #{tpu_custom_call.1} parent=11 // pred_fallthru
          _
        // Predicated region
        $region17: #{tpu_custom_call.1} parent=11 // pred_check
          %p124 = pneg %p80
        $region18: #{tpu_custom_call.1} parent=11 // pred_check_branch
          %126 = sbr.rel (%p124) target = $region20
        $region19: #{tpu_custom_call.1} parent=11 // pred_region
          _
        $region20: #{tpu_custom_call.1} parent=11 // pred_fallthru
          _
      $region12: #{tpu_custom_call.1} parent=5 // pred_fallthru
        _
      %p127 = scmp.lt.s32.totalorder %s12, 8
      // Predicated region
      $region21: #{tpu_custom_call.1} parent=5 // pred_check
        %p128 = pneg %p127
      $region22: #{tpu_custom_call.1} parent=5 // pred_check_branch
        %130 = sbr.rel (%p128) target = $region24
      $region23: #{tpu_custom_call.1} parent=5 // pred_region
        // Predicated region
        $region25: #{tpu_custom_call.1} parent=23 // pred_check
          %p131 = pneg %p32
        $region26: #{tpu_custom_call.1} parent=23 // pred_check_branch
          %133 = sbr.rel (%p131) target = $region28
        $region27: #{tpu_custom_call.1} parent=23 // pred_region
          %s134 = smul.u32 8, %s12
          %p135 = scmp.lt.s32.totalorder %s134, 63
          %s136 = scalar_select %p135, %s134, 63
          %s137 = smul.addr %s136, 8
          %s138 = scalar_lea.vmem %s0, %s137
          %s139 = smul.u32 8, %s12
        $region28: #{tpu_custom_call.1} parent=23 // pred_fallthru
          _
      $region24: #{tpu_custom_call.1} parent=5 // pred_fallthru
        _
      %p140 = scmp.le.s32.totalorder 1, %s12
      %p141 = scmp.lt.s32.totalorder %s12, 9
      %p142 = pnand %p140, %p141
      %p143 = pneg %p142
      // Predicated region
      $region29: #{tpu_custom_call.1} parent=5 // pred_check
        _
      $region30: #{tpu_custom_call.1} parent=5 // pred_check_branch
        %145 = sbr.rel (%p142) target = $region32
      $region31: #{tpu_custom_call.1} parent=5 // pred_region
        %s146 = ssub.s32 %s12, 1
        %s147 = smul.u32 8, %s17
        %p148 = scmp.lt.s32.totalorder %s147, 63
        %s149 = scalar_select %p148, %s147, 63
        %s150 = smul.addr %s149, 8
        %s151 = scalar_lea.vmem %s0, %s150
        %p152 = pneg %p38
        %p153 = pneg %p35
        %p154 = pneg %p59
        %p155 = pneg %p56
        %p156 = pneg %p80
        %p157 = pneg %p77
        %p158 = pneg %p106
        %p159 = pneg %p103
        %s160 = sand.u32 %s93, 1
        %s161 = scalar_lea.sflag [#allocation3], %s160
        %s162 = sand.u32 %s93, 1
        %s163 = smul.addr %s162, 64
        %s164 = scalar_lea.vmem [#allocation2], %s163
        %s165 = smul.u32 8, %s17
        %p166 = scmp.lt.s32.totalorder %s165, 63
        %s167 = scalar_select %p166, %s165, 63
        %s168 = smul.addr %s167, 8
        %s169 = scalar_lea.vmem %s0, %s168
        %s170 = smul.u32 8, %s17
        %s171 = smul.u32 8, %s17
        %v172 = vld [vmem:[%s169] sm:$0xff]
        %v173 = vld [vmem:[%s169 + $0x8] sm:$0xff]
        %v174 = vld [vmem:[%s169 + $0x10] sm:$0xff]
        %v175 = vld [vmem:[%s169 + $0x18] sm:$0xff]
        %v176 = vld [vmem:[%s169 + $0x20] sm:$0xff]
        %v177 = vld [vmem:[%s169 + $0x28] sm:$0xff]
        %v178 = vld [vmem:[%s169 + $0x30] sm:$0xff]
        %v179 = vld [vmem:[%s169 + $0x38] sm:$0xff]
        %v180 = vld [vmem:[%s2] sm:$0xf]
        %vm181 = vcmask 31744
        %v183 = vsel %vm181, %v172, 0
        %v186 = vsel %vm181, %v173, 0
        %v189 = vsel %vm181, %v174, 0
        %v192 = vsel %vm181, %v175, 0
        %v195 = vsel %vm181, %v176, 0
        %v198 = vsel %vm181, %v177, 0
        %v201 = vsel %vm181, %v178, 0
        %v204 = vsel %vm181, %v179, 0
        %vm206 = vcmask 1043456
        %v208 = vsel %vm206, %v180, 0
        %210 = vmatprep.subr.mxu0 0.0
        %v211 = vand.u32 %v208, 4294901760
        %212 = vmatpush1.msra.mxu0 %v211
        %213 = vmatprep.subr.mxu0 0.0
        %214 = vmatpush1.msra.mxu0 0.0
        %215 = vmatprep.subr.mxu0 0.0
        %216 = vmatpush1.msra.mxu0 0.0
        %217 = vmatprep.subr.mxu0 0.0
        %218 = vmatpush1.msra.mxu0 0.0
        %219 = vmatprep.subr.mxu0 0.0
        %220 = vmatpush1.msra.mxu0 0.0
        %221 = vmatprep.subr.mxu0 0.0
        %222 = vmatpush1.msra.mxu0 0.0
        %223 = vmatprep.subr.mxu0 0.0
        %224 = vmatpush1.msra.mxu0 0.0
        %225 = vmatprep.subr.mxu0 0.0
        %226 = vmatpush1.msra.mxu0 0.0
        %227 = vmatprep.subr.mxu0 0.0
        %228 = vmatpush1.msra.mxu0 0.0
        %229 = vmatprep.subr.mxu0 0.0
        %230 = vmatpush1.msra.mxu0 0.0
        %231 = vmatprep.subr.mxu0 0.0
        %232 = vmatpush1.msra.mxu0 0.0
        %233 = vmatprep.subr.mxu0 0.0
        %234 = vmatpush1.msra.mxu0 0.0
        %235 = vmatprep.subr.mxu0 0.0
        %236 = vmatpush1.msra.mxu0 0.0
        %237 = vmatprep.subr.mxu0 0.0
        %238 = vmatpush1.msra.mxu0 0.0
        %239 = vmatprep.subr.mxu0 0.0
        %240 = vmatpush1.msra.mxu0 0.0
        %241 = vmatprep.subr.mxu0 0.0
        %242 = vmatpush1.msra.mxu0 0.0
        %243 = vmatprep.subr.mxu0 0.0
        %244 = vmatpush1.msra.mxu0 0.0
        %245 = vmatprep.subr.mxu0 0.0
        %246 = vmatpush1.msra.mxu0 0.0
        %247 = vmatprep.subr.mxu0 0.0
        %248 = vmatpush1.msra.mxu0 0.0
        %249 = vmatprep.subr.mxu0 0.0
        %250 = vmatpush1.msra.mxu0 0.0
        %251 = vmatprep.subr.mxu0 0.0
        %252 = vmatpush1.msra.mxu0 0.0
        %253 = vmatprep.subr.mxu0 0.0
        %254 = vmatpush1.msra.mxu0 0.0
        %255 = vmatprep.subr.mxu0 0.0
        %256 = vmatpush1.msra.mxu0 0.0
        %257 = vmatprep.subr.mxu0 0.0
        %258 = vmatpush1.msra.mxu0 0.0
        %259 = vmatprep.subr.mxu0 0.0
        %260 = vmatpush1.msra.mxu0 0.0
        %261 = vmatprep.subr.mxu0 0.0
        %262 = vmatpush1.msra.mxu0 0.0
        %263 = vmatprep.subr.mxu0 0.0
        %264 = vmatpush1.msra.mxu0 0.0
        %265 = vmatprep.subr.mxu0 0.0
        %266 = vmatpush1.msra.mxu0 0.0
        %267 = vmatprep.subr.mxu0 0.0
        %268 = vmatpush1.msra.mxu0 0.0
        %269 = vmatprep.subr.mxu0 0.0
        %270 = vmatpush1.msra.mxu0 0.0
        %271 = vmatprep.subr.mxu0 0.0
        %272 = vmatpush1.msra.mxu0 0.0
        %273 = vmatprep.subr.mxu0 0.0
        %274 = vmatpush1.msra.mxu0 0.0
        %275 = vmatprep.mubr.f32.mxu0 0.0
        %v276 = vand.u32 %v183, 4294901760
        %v277 = vsub.f32 %v183, %v276
        %v278 = vand.u32 %v277, 4294901760
        %v279 = vsub.f32 %v277, %v278
        %v280 = vand.u32 %v279, 4294901760
        %281 = vmatmul.mubr.f32.gmra.mrb[0].mxu0 %v280
        %v282 = vpop.f32.mrb[0].mxu0
        %v283 = vadd.f32 0.0, %v282
        %v284 = vpop.f32.mrb[0].mxu0
        %285 = vmatprep.mubr.f32.mxu0 0.0
        %v286 = vand.u32 %v186, 4294901760
        %v287 = vsub.f32 %v186, %v286
        %v288 = vand.u32 %v287, 4294901760
        %v289 = vsub.f32 %v287, %v288
        %v290 = vand.u32 %v289, 4294901760
        %291 = vmatmul.mubr.f32.gmra.mrb[0].mxu0 %v290
        %v292 = vpop.f32.mrb[0].mxu0
        %v293 = vadd.f32 0.0, %v292
        %v294 = vpop.f32.mrb[0].mxu0
        %295 = vmatprep.mubr.f32.mxu0 0.0
        %v296 = vand.u32 %v189, 4294901760
        %v297 = vsub.f32 %v189, %v296
        %v298 = vand.u32 %v297, 4294901760
        %v299 = vsub.f32 %v297, %v298
        %v300 = vand.u32 %v299, 4294901760
        %301 = vmatmul.mubr.f32.gmra.mrb[0].mxu0 %v300
        %v302 = vpop.f32.mrb[0].mxu0
        %v303 = vadd.f32 0.0, %v302
        %v304 = vpop.f32.mrb[0].mxu0
        %305 = vmatprep.mubr.f32.mxu0 0.0
        %v306 = vand.u32 %v192, 4294901760
        %v307 = vsub.f32 %v192, %v306
        %v308 = vand.u32 %v307, 4294901760
        %v309 = vsub.f32 %v307, %v308
        %v310 = vand.u32 %v309, 4294901760
        %311 = vmatmul.mubr.f32.gmra.mrb[0].mxu0 %v310
        %v312 = vpop.f32.mrb[0].mxu0
        %v313 = vadd.f32 0.0, %v312
        %v314 = vpop.f32.mrb[0].mxu0
        %315 = vmatprep.mubr.f32.mxu0 0.0
        %v316 = vand.u32 %v195, 4294901760
        %v317 = vsub.f32 %v195, %v316
        %v318 = vand.u32 %v317, 4294901760
        %v319 = vsub.f32 %v317, %v318
        %v320 = vand.u32 %v319, 4294901760
        %321 = vmatmul.mubr.f32.gmra.mrb[0].mxu0 %v320
        %v322 = vpop.f32.mrb[0].mxu0
        %v323 = vadd.f32 0.0, %v322
        %v324 = vpop.f32.mrb[0].mxu0
        %325 = vmatprep.mubr.f32.mxu0 0.0
        %v326 = vand.u32 %v198, 4294901760
        %v327 = vsub.f32 %v198, %v326
        %v328 = vand.u32 %v327, 4294901760
        %v329 = vsub.f32 %v327, %v328
        %v330 = vand.u32 %v329, 4294901760
        %331 = vmatmul.mubr.f32.gmra.mrb[0].mxu0 %v330
        %v332 = vpop.f32.mrb[0].mxu0
        %v333 = vadd.f32 0.0, %v332
        %v334 = vpop.f32.mrb[0].mxu0
        %335 = vmatprep.mubr.f32.mxu0 0.0
        %v336 = vand.u32 %v201, 4294901760
        %v337 = vsub.f32 %v201, %v336
        %v338 = vand.u32 %v337, 4294901760
        %v339 = vsub.f32 %v337, %v338
        %v340 = vand.u32 %v339, 4294901760
        %341 = vmatmul.mubr.f32.gmra.mrb[0].mxu0 %v340
        %v342 = vpop.f32.mrb[0].mxu0
        %v343 = vadd.f32 0.0, %v342
        %v344 = vpop.f32.mrb[0].mxu0
        %345 = vmatprep.mubr.f32.mxu0 0.0
        %v346 = vand.u32 %v204, 4294901760
        %v347 = vsub.f32 %v204, %v346
        %v348 = vand.u32 %v347, 4294901760
        %v349 = vsub.f32 %v347, %v348
        %v350 = vand.u32 %v349, 4294901760
        %351 = vmatmul.mubr.f32.gmra.mrb[0].mxu0 %v350
        %v352 = vpop.f32.mrb[0].mxu0
        %v353 = vadd.f32 0.0, %v352
        %v354 = vpop.f32.mrb[0].mxu0
        %355 = vdwg.mxu0
        %356 = vmatprep.subr.mxu0 0.0
        %v357 = vand.u32 %v208, 4294901760
        %v358 = vsub.f32 %v208, %v357
        %v359 = vand.u32 %v358, 4294901760
        %v360 = vsub.f32 %v358, %v359
        %v361 = vand.u32 %v360, 4294901760
        %362 = vmatpush1.msra.mxu0 %v361
        %363 = vmatprep.subr.mxu0 0.0
        %364 = vmatpush1.msra.mxu0 0.0
        %365 = vmatprep.subr.mxu0 0.0
        %366 = vmatpush1.msra.mxu0 0.0
        %367 = vmatprep.subr.mxu0 0.0
        %368 = vmatpush1.msra.mxu0 0.0
        %369 = vmatprep.subr.mxu0 0.0
        %370 = vmatpush1.msra.mxu0 0.0
        %371 = vmatprep.subr.mxu0 0.0
        %372 = vmatpush1.msra.mxu0 0.0
        %373 = vmatprep.subr.mxu0 0.0
        %374 = vmatpush1.msra.mxu0 0.0
        %375 = vmatprep.subr.mxu0 0.0
        %376 = vmatpush1.msra.mxu0 0.0
        %377 = vmatprep.subr.mxu0 0.0
        %378 = vmatpush1.msra.mxu0 0.0
        %379 = vmatprep.subr.mxu0 0.0
        %380 = vmatpush1.msra.mxu0 0.0
        %381 = vmatprep.subr.mxu0 0.0
        %382 = vmatpush1.msra.mxu0 0.0
        %383 = vmatprep.subr.mxu0 0.0
        %384 = vmatpush1.msra.mxu0 0.0
        %385 = vmatprep.subr.mxu0 0.0
        %386 = vmatpush1.msra.mxu0 0.0
        %387 = vmatprep.subr.mxu0 0.0
        %388 = vmatpush1.msra.mxu0 0.0
        %389 = vmatprep.subr.mxu0 0.0
        %390 = vmatpush1.msra.mxu0 0.0
        %391 = vmatprep.subr.mxu0 0.0
        %392 = vmatpush1.msra.mxu0 0.0
        %393 = vmatprep.subr.mxu0 0.0
        %394 = vmatpush1.msra.mxu0 0.0
        %395 = vmatprep.subr.mxu0 0.0
        %396 = vmatpush1.msra.mxu0 0.0
        %397 = vmatprep.subr.mxu0 0.0
        %398 = vmatpush1.msra.mxu0 0.0
        %399 = vmatprep.subr.mxu0 0.0
        %400 = vmatpush1.msra.mxu0 0.0
        %401 = vmatprep.subr.mxu0 0.0
        %402 = vmatpush1.msra.mxu0 0.0
        %403 = vmatprep.subr.mxu0 0.0
        %404 = vmatpush1.msra.mxu0 0.0
        %405 = vmatprep.subr.mxu0 0.0
        %406 = vmatpush1.msra.mxu0 0.0
        %407 = vmatprep.subr.mxu0 0.0
        %408 = vmatpush1.msra.mxu0 0.0
        %409 = vmatprep.subr.mxu0 0.0
        %410 = vmatpush1.msra.mxu0 0.0
        %411 = vmatprep.subr.mxu0 0.0
        %412 = vmatpush1.msra.mxu0 0.0
        %413 = vmatprep.subr.mxu0 0.0
        %414 = vmatpush1.msra.mxu0 0.0
        %415 = vmatprep.subr.mxu0 0.0
        %416 = vmatpush1.msra.mxu0 0.0
        %417 = vmatprep.subr.mxu0 0.0
        %418 = vmatpush1.msra.mxu0 0.0
        %419 = vmatprep.subr.mxu0 0.0
        %420 = vmatpush1.msra.mxu0 0.0
        %421 = vmatprep.subr.mxu0 0.0
        %422 = vmatpush1.msra.mxu0 0.0
        %423 = vmatprep.subr.mxu0 0.0
        %424 = vmatpush1.msra.mxu0 0.0
        %425 = vmatprep.mubr.f32.mxu0 0.0
        %v426 = vand.u32 %v183, 4294901760
        %427 = vmatmul.mubr.f32.gmra.mrb[0].mxu0 %v426
        %v428 = vpop.f32.mrb[0].mxu0
        %v429 = vadd.f32 %v283, %v428
        %v430 = vpop.f32.mrb[0].mxu0
        %431 = vmatprep.mubr.f32.mxu0 0.0
        %v432 = vand.u32 %v186, 4294901760
        %433 = vmatmul.mubr.f32.gmra.mrb[0].mxu0 %v432
        %v434 = vpop.f32.mrb[0].mxu0
        %v435 = vadd.f32 %v293, %v434
        %v436 = vpop.f32.mrb[0].mxu0
        %437 = vmatprep.mubr.f32.mxu0 0.0
        %v438 = vand.u32 %v189, 4294901760
        %439 = vmatmul.mubr.f32.gmra.mrb[0].mxu0 %v438
        %v440 = vpop.f32.mrb[0].mxu0
        %v441 = vadd.f32 %v303, %v440
        %v442 = vpop.f32.mrb[0].mxu0
        %443 = vmatprep.mubr.f32.mxu0 0.0
        %v444 = vand.u32 %v192, 4294901760
        %445 = vmatmul.mubr.f32.gmra.mrb[0].mxu0 %v444
        %v446 = vpop.f32.mrb[0].mxu0
        %v447 = vadd.f32 %v313, %v446
        %v448 = vpop.f32.mrb[0].mxu0
        %449 = vmatprep.mubr.f32.mxu0 0.0
        %v450 = vand.u32 %v195, 4294901760
        %451 = vmatmul.mubr.f32.gmra.mrb[0].mxu0 %v450
        %v452 = vpop.f32.mrb[0].mxu0
        %v453 = vadd.f32 %v323, %v452
        %v454 = vpop.f32.mrb[0].mxu0
        %455 = vmatprep.mubr.f32.mxu0 0.0
        %v456 = vand.u32 %v198, 4294901760
        %457 = vmatmul.mubr.f32.gmra.mrb[0].mxu0 %v456
        %v458 = vpop.f32.mrb[0].mxu0
        %v459 = vadd.f32 %v333, %v458
        %v460 = vpop.f32.mrb[0].mxu0
        %461 = vmatprep.mubr.f32.mxu0 0.0
        %v462 = vand.u32 %v201, 4294901760
        %463 = vmatmul.mubr.f32.gmra.mrb[0].mxu0 %v462
        %v464 = vpop.f32.mrb[0].mxu0
        %v465 = vadd.f32 %v343, %v464
        %v466 = vpop.f32.mrb[0].mxu0
        %467 = vmatprep.mubr.f32.mxu0 0.0
        %v468 = vand.u32 %v204, 4294901760
        %469 = vmatmul.mubr.f32.gmra.mrb[0].mxu0 %v468
        %v470 = vpop.f32.mrb[0].mxu0
        %v471 = vadd.f32 %v353, %v470
        %v472 = vpop.f32.mrb[0].mxu0
        %473 = vdwg.mxu0
        %474 = vmatprep.subr.mxu0 0.0
        %v475 = vand.u32 %v208, 4294901760
        %v476 = vsub.f32 %v208, %v475
        %477 = vmatpush1.msra.mxu0 %v476
        %478 = vmatprep.subr.mxu0 0.0
        %479 = vmatpush1.msra.mxu0 0.0
        %480 = vmatprep.subr.mxu0 0.0
        %481 = vmatpush1.msra.mxu0 0.0
        %482 = vmatprep.subr.mxu0 0.0
        %483 = vmatpush1.msra.mxu0 0.0
        %484 = vmatprep.subr.mxu0 0.0
        %485 = vmatpush1.msra.mxu0 0.0
        %486 = vmatprep.subr.mxu0 0.0
        %487 = vmatpush1.msra.mxu0 0.0
        %488 = vmatprep.subr.mxu0 0.0
        %489 = vmatpush1.msra.mxu0 0.0
        %490 = vmatprep.subr.mxu0 0.0
        %491 = vmatpush1.msra.mxu0 0.0
        %492 = vmatprep.subr.mxu0 0.0
        %493 = vmatpush1.msra.mxu0 0.0
        %494 = vmatprep.subr.mxu0 0.0
        %495 = vmatpush1.msra.mxu0 0.0
        %496 = vmatprep.subr.mxu0 0.0
        %497 = vmatpush1.msra.mxu0 0.0
        %498 = vmatprep.subr.mxu0 0.0
        %499 = vmatpush1.msra.mxu0 0.0
        %500 = vmatprep.subr.mxu0 0.0
        %501 = vmatpush1.msra.mxu0 0.0
        %502 = vmatprep.subr.mxu0 0.0
        %503 = vmatpush1.msra.mxu0 0.0
        %504 = vmatprep.subr.mxu0 0.0
        %505 = vmatpush1.msra.mxu0 0.0
        %506 = vmatprep.subr.mxu0 0.0
        %507 = vmatpush1.msra.mxu0 0.0
        %508 = vmatprep.subr.mxu0 0.0
        %509 = vmatpush1.msra.mxu0 0.0
        %510 = vmatprep.subr.mxu0 0.0
        %511 = vmatpush1.msra.mxu0 0.0
        %512 = vmatprep.subr.mxu0 0.0
        %513 = vmatpush1.msra.mxu0 0.0
        %514 = vmatprep.subr.mxu0 0.0
        %515 = vmatpush1.msra.mxu0 0.0
        %516 = vmatprep.subr.mxu0 0.0
        %517 = vmatpush1.msra.mxu0 0.0
        %518 = vmatprep.subr.mxu0 0.0
        %519 = vmatpush1.msra.mxu0 0.0
        %520 = vmatprep.subr.mxu0 0.0
        %521 = vmatpush1.msra.mxu0 0.0
        %522 = vmatprep.subr.mxu0 0.0
        %523 = vmatpush1.msra.mxu0 0.0
        %524 = vmatprep.subr.mxu0 0.0
        %525 = vmatpush1.msra.mxu0 0.0
        %526 = vmatprep.subr.mxu0 0.0
        %527 = vmatpush1.msra.mxu0 0.0
        %528 = vmatprep.subr.mxu0 0.0
        %529 = vmatpush1.msra.mxu0 0.0
        %530 = vmatprep.subr.mxu0 0.0
        %531 = vmatpush1.msra.mxu0 0.0
        %532 = vmatprep.subr.mxu0 0.0
        %533 = vmatpush1.msra.mxu0 0.0
        %534 = vmatprep.subr.mxu0 0.0
        %535 = vmatpush1.msra.mxu0 0.0
        %536 = vmatprep.subr.mxu0 0.0
        %537 = vmatpush1.msra.mxu0 0.0
        %538 = vmatprep.subr.mxu0 0.0
        %539 = vmatpush1.msra.mxu0 0.0
        %540 = vmatprep.mubr.f32.mxu0 0.0
        %v541 = vand.u32 %v183, 4294901760
        %v542 = vsub.f32 %v183, %v541
        %543 = vmatmul.mubr.f32.gmra.mrb[0].mxu0 %v542
        %v544 = vpop.f32.mrb[0].mxu0
        %v545 = vadd.f32 %v429, %v544
        %v546 = vpop.f32.mrb[0].mxu0
        %547 = vmatprep.mubr.f32.mxu0 0.0
        %v548 = vand.u32 %v186, 4294901760
        %v549 = vsub.f32 %v186, %v548
        %550 = vmatmul.mubr.f32.gmra.mrb[0].mxu0 %v549
        %v551 = vpop.f32.mrb[0].mxu0
        %v552 = vadd.f32 %v435, %v551
        %v553 = vpop.f32.mrb[0].mxu0
        %554 = vmatprep.mubr.f32.mxu0 0.0
        %v555 = vand.u32 %v189, 4294901760
        %v556 = vsub.f32 %v189, %v555
        %557 = vmatmul.mubr.f32.gmra.mrb[0].mxu0 %v556
        %v558 = vpop.f32.mrb[0].mxu0
        %v559 = vadd.f32 %v441, %v558
        %v560 = vpop.f32.mrb[0].mxu0
        %561 = vmatprep.mubr.f32.mxu0 0.0
        %v562 = vand.u32 %v192, 4294901760
        %v563 = vsub.f32 %v192, %v562
        %564 = vmatmul.mubr.f32.gmra.mrb[0].mxu0 %v563
        %v565 = vpop.f32.mrb[0].mxu0
        %v566 = vadd.f32 %v447, %v565
        %v567 = vpop.f32.mrb[0].mxu0
        %568 = vmatprep.mubr.f32.mxu0 0.0
        %v569 = vand.u32 %v195, 4294901760
        %v570 = vsub.f32 %v195, %v569
        %571 = vmatmul.mubr.f32.gmra.mrb[0].mxu0 %v570
        %v572 = vpop.f32.mrb[0].mxu0
        %v573 = vadd.f32 %v453, %v572
        %v574 = vpop.f32.mrb[0].mxu0
        %575 = vmatprep.mubr.f32.mxu0 0.0
        %v576 = vand.u32 %v198, 4294901760
        %v577 = vsub.f32 %v198, %v576
        %578 = vmatmul.mubr.f32.gmra.mrb[0].mxu0 %v577
        %v579 = vpop.f32.mrb[0].mxu0
        %v580 = vadd.f32 %v459, %v579
        %v581 = vpop.f32.mrb[0].mxu0
        %582 = vmatprep.mubr.f32.mxu0 0.0
        %v583 = vand.u32 %v201, 4294901760
        %v584 = vsub.f32 %v201, %v583
        %585 = vmatmul.mubr.f32.gmra.mrb[0].mxu0 %v584
        %v586 = vpop.f32.mrb[0].mxu0
        %v587 = vadd.f32 %v465, %v586
        %v588 = vpop.f32.mrb[0].mxu0
        %589 = vmatprep.mubr.f32.mxu0 0.0
        %v590 = vand.u32 %v204, 4294901760
        %v591 = vsub.f32 %v204, %v590
        %592 = vmatmul.mubr.f32.gmra.mrb[0].mxu0 %v591
        %v593 = vpop.f32.mrb[0].mxu0
        %v594 = vadd.f32 %v471, %v593
        %v595 = vpop.f32.mrb[0].mxu0
        %596 = vdwg.mxu0
        %597 = vmatprep.subr.mxu0 0.0
        %v598 = vand.u32 %v208, 4294901760
        %599 = vmatpush1.msra.mxu0 %v598
        %600 = vmatprep.subr.mxu0 0.0
        %601 = vmatpush1.msra.mxu0 0.0
        %602 = vmatprep.subr.mxu0 0.0
        %603 = vmatpush1.msra.mxu0 0.0
        %604 = vmatprep.subr.mxu0 0.0
        %605 = vmatpush1.msra.mxu0 0.0
        %606 = vmatprep.subr.mxu0 0.0
        %607 = vmatpush1.msra.mxu0 0.0
        %608 = vmatprep.subr.mxu0 0.0
        %609 = vmatpush1.msra.mxu0 0.0
        %610 = vmatprep.subr.mxu0 0.0
        %611 = vmatpush1.msra.mxu0 0.0
        %612 = vmatprep.subr.mxu0 0.0
        %613 = vmatpush1.msra.mxu0 0.0
        %614 = vmatprep.subr.mxu0 0.0
        %615 = vmatpush1.msra.mxu0 0.0
        %616 = vmatprep.subr.mxu0 0.0
        %617 = vmatpush1.msra.mxu0 0.0
        %618 = vmatprep.subr.mxu0 0.0
        %619 = vmatpush1.msra.mxu0 0.0
        %620 = vmatprep.subr.mxu0 0.0
        %621 = vmatpush1.msra.mxu0 0.0
        %622 = vmatprep.subr.mxu0 0.0
        %623 = vmatpush1.msra.mxu0 0.0
        %624 = vmatprep.subr.mxu0 0.0
        %625 = vmatpush1.msra.mxu0 0.0
        %626 = vmatprep.subr.mxu0 0.0
        %627 = vmatpush1.msra.mxu0 0.0
        %628 = vmatprep.subr.mxu0 0.0
        %629 = vmatpush1.msra.mxu0 0.0
        %630 = vmatprep.subr.mxu0 0.0
        %631 = vmatpush1.msra.mxu0 0.0
        %632 = vmatprep.subr.mxu0 0.0
        %633 = vmatpush1.msra.mxu0 0.0
        %634 = vmatprep.subr.mxu0 0.0
        %635 = vmatpush1.msra.mxu0 0.0
        %636 = vmatprep.subr.mxu0 0.0
        %637 = vmatpush1.msra.mxu0 0.0
        %638 = vmatprep.subr.mxu0 0.0
        %639 = vmatpush1.msra.mxu0 0.0
        %640 = vmatprep.subr.mxu0 0.0
        %641 = vmatpush1.msra.mxu0 0.0
        %642 = vmatprep.subr.mxu0 0.0
        %643 = vmatpush1.msra.mxu0 0.0
        %644 = vmatprep.subr.mxu0 0.0
        %645 = vmatpush1.msra.mxu0 0.0
        %646 = vmatprep.subr.mxu0 0.0
        %647 = vmatpush1.msra.mxu0 0.0
        %648 = vmatprep.subr.mxu0 0.0
        %649 = vmatpush1.msra.mxu0 0.0
        %650 = vmatprep.subr.mxu0 0.0
        %651 = vmatpush1.msra.mxu0 0.0
        %652 = vmatprep.subr.mxu0 0.0
        %653 = vmatpush1.msra.mxu0 0.0
        %654 = vmatprep.subr.mxu0 0.0
        %655 = vmatpush1.msra.mxu0 0.0
        %656 = vmatprep.subr.mxu0 0.0
        %657 = vmatpush1.msra.mxu0 0.0
        %658 = vmatprep.subr.mxu0 0.0
        %659 = vmatpush1.msra.mxu0 0.0
        %660 = vmatprep.subr.mxu0 0.0
        %661 = vmatpush1.msra.mxu0 0.0
        %662 = vmatprep.mubr.f32.mxu0 0.0
        %v663 = vand.u32 %v183, 4294901760
        %v664 = vsub.f32 %v183, %v663
        %v665 = vand.u32 %v664, 4294901760
        %666 = vmatmul.mubr.f32.gmra.mrb[0].mxu0 %v665
        %v667 = vpop.f32.mrb[0].mxu0
        %v668 = vadd.f32 %v545, %v667
        %v669 = vpop.f32.mrb[0].mxu0
        %670 = vmatprep.mubr.f32.mxu0 0.0
        %v671 = vand.u32 %v186, 4294901760
        %v672 = vsub.f32 %v186, %v671
        %v673 = vand.u32 %v672, 4294901760
        %674 = vmatmul.mubr.f32.gmra.mrb[0].mxu0 %v673
        %v675 = vpop.f32.mrb[0].mxu0
        %v676 = vadd.f32 %v552, %v675
        %v677 = vpop.f32.mrb[0].mxu0
        %678 = vmatprep.mubr.f32.mxu0 0.0
        %v679 = vand.u32 %v189, 4294901760
        %v680 = vsub.f32 %v189, %v679
        %v681 = vand.u32 %v680, 4294901760
        %682 = vmatmul.mubr.f32.gmra.mrb[0].mxu0 %v681
        %v683 = vpop.f32.mrb[0].mxu0
        %v684 = vadd.f32 %v559, %v683
        %v685 = vpop.f32.mrb[0].mxu0
        %686 = vmatprep.mubr.f32.mxu0 0.0
        %v687 = vand.u32 %v192, 4294901760
        %v688 = vsub.f32 %v192, %v687
        %v689 = vand.u32 %v688, 4294901760
        %690 = vmatmul.mubr.f32.gmra.mrb[0].mxu0 %v689
        %v691 = vpop.f32.mrb[0].mxu0
        %v692 = vadd.f32 %v566, %v691
        %v693 = vpop.f32.mrb[0].mxu0
        %694 = vmatprep.mubr.f32.mxu0 0.0
        %v695 = vand.u32 %v195, 4294901760
        %v696 = vsub.f32 %v195, %v695
        %v697 = vand.u32 %v696, 4294901760
        %698 = vmatmul.mubr.f32.gmra.mrb[0].mxu0 %v697
        %v699 = vpop.f32.mrb[0].mxu0
        %v700 = vadd.f32 %v573, %v699
        %v701 = vpop.f32.mrb[0].mxu0
        %702 = vmatprep.mubr.f32.mxu0 0.0
        %v703 = vand.u32 %v198, 4294901760
        %v704 = vsub.f32 %v198, %v703
        %v705 = vand.u32 %v704, 4294901760
        %706 = vmatmul.mubr.f32.gmra.mrb[0].mxu0 %v705
        %v707 = vpop.f32.mrb[0].mxu0
        %v708 = vadd.f32 %v580, %v707
        %v709 = vpop.f32.mrb[0].mxu0
        %710 = vmatprep.mubr.f32.mxu0 0.0
        %v711 = vand.u32 %v201, 4294901760
        %v712 = vsub.f32 %v201, %v711
        %v713 = vand.u32 %v712, 4294901760
        %714 = vmatmul.mubr.f32.gmra.mrb[0].mxu0 %v713
        %v715 = vpop.f32.mrb[0].mxu0
        %v716 = vadd.f32 %v587, %v715
        %v717 = vpop.f32.mrb[0].mxu0
        %718 = vmatprep.mubr.f32.mxu0 0.0
        %v719 = vand.u32 %v204, 4294901760
        %v720 = vsub.f32 %v204, %v719
        %v721 = vand.u32 %v720, 4294901760
        %722 = vmatmul.mubr.f32.gmra.mrb[0].mxu0 %v721
        %v723 = vpop.f32.mrb[0].mxu0
        %v724 = vadd.f32 %v594, %v723
        %v725 = vpop.f32.mrb[0].mxu0
        %726 = vdwg.mxu0
        %727 = vmatprep.subr.mxu0 0.0
        %v728 = vand.u32 %v208, 4294901760
        %v729 = vsub.f32 %v208, %v728
        %v730 = vand.u32 %v729, 4294901760
        %731 = vmatpush1.msra.mxu0 %v730
        %732 = vmatprep.subr.mxu0 0.0
        %733 = vmatpush1.msra.mxu0 0.0
        %734 = vmatprep.subr.mxu0 0.0
        %735 = vmatpush1.msra.mxu0 0.0
        %736 = vmatprep.subr.mxu0 0.0
        %737 = vmatpush1.msra.mxu0 0.0
        %738 = vmatprep.subr.mxu0 0.0
        %739 = vmatpush1.msra.mxu0 0.0
        %740 = vmatprep.subr.mxu0 0.0
        %741 = vmatpush1.msra.mxu0 0.0
        %742 = vmatprep.subr.mxu0 0.0
        %743 = vmatpush1.msra.mxu0 0.0
        %744 = vmatprep.subr.mxu0 0.0
        %745 = vmatpush1.msra.mxu0 0.0
        %746 = vmatprep.subr.mxu0 0.0
        %747 = vmatpush1.msra.mxu0 0.0
        %748 = vmatprep.subr.mxu0 0.0
        %749 = vmatpush1.msra.mxu0 0.0
        %750 = vmatprep.subr.mxu0 0.0
        %751 = vmatpush1.msra.mxu0 0.0
        %752 = vmatprep.subr.mxu0 0.0
        %753 = vmatpush1.msra.mxu0 0.0
        %754 = vmatprep.subr.mxu0 0.0
        %755 = vmatpush1.msra.mxu0 0.0
        %756 = vmatprep.subr.mxu0 0.0
        %757 = vmatpush1.msra.mxu0 0.0
        %758 = vmatprep.subr.mxu0 0.0
        %759 = vmatpush1.msra.mxu0 0.0
        %760 = vmatprep.subr.mxu0 0.0
        %761 = vmatpush1.msra.mxu0 0.0
        %762 = vmatprep.subr.mxu0 0.0
        %763 = vmatpush1.msra.mxu0 0.0
        %764 = vmatprep.subr.mxu0 0.0
        %765 = vmatpush1.msra.mxu0 0.0
        %766 = vmatprep.subr.mxu0 0.0
        %767 = vmatpush1.msra.mxu0 0.0
        %768 = vmatprep.subr.mxu0 0.0
        %769 = vmatpush1.msra.mxu0 0.0
        %770 = vmatprep.subr.mxu0 0.0
        %771 = vmatpush1.msra.mxu0 0.0
        %772 = vmatprep.subr.mxu0 0.0
        %773 = vmatpush1.msra.mxu0 0.0
        %774 = vmatprep.subr.mxu0 0.0
        %775 = vmatpush1.msra.mxu0 0.0
        %776 = vmatprep.subr.mxu0 0.0
        %777 = vmatpush1.msra.mxu0 0.0
        %778 = vmatprep.subr.mxu0 0.0
        %779 = vmatpush1.msra.mxu0 0.0
        %780 = vmatprep.subr.mxu0 0.0
        %781 = vmatpush1.msra.mxu0 0.0
        %782 = vmatprep.subr.mxu0 0.0
        %783 = vmatpush1.msra.mxu0 0.0
        %784 = vmatprep.subr.mxu0 0.0
        %785 = vmatpush1.msra.mxu0 0.0
        %786 = vmatprep.subr.mxu0 0.0
        %787 = vmatpush1.msra.mxu0 0.0
        %788 = vmatprep.subr.mxu0 0.0
        %789 = vmatpush1.msra.mxu0 0.0
        %790 = vmatprep.subr.mxu0 0.0
        %791 = vmatpush1.msra.mxu0 0.0
        %792 = vmatprep.subr.mxu0 0.0
        %793 = vmatpush1.msra.mxu0 0.0
        %794 = vmatprep.mubr.f32.mxu0 0.0
        %v795 = vand.u32 %v183, 4294901760
        %796 = vmatmul.mubr.f32.gmra.mrb[0].mxu0 %v795
        %v797 = vpop.f32.mrb[0].mxu0
        %v798 = vadd.f32 %v668, %v797
        %v799 = vpop.f32.mrb[0].mxu0
        %800 = vmatprep.mubr.f32.mxu0 0.0
        %v801 = vand.u32 %v186, 4294901760
        %802 = vmatmul.mubr.f32.gmra.mrb[0].mxu0 %v801
        %v803 = vpop.f32.mrb[0].mxu0
        %v804 = vadd.f32 %v676, %v803
        %v805 = vpop.f32.mrb[0].mxu0
        %806 = vmatprep.mubr.f32.mxu0 0.0
        %v807 = vand.u32 %v189, 4294901760
        %808 = vmatmul.mubr.f32.gmra.mrb[0].mxu0 %v807
        %v809 = vpop.f32.mrb[0].mxu0
        %v810 = vadd.f32 %v684, %v809
        %v811 = vpop.f32.mrb[0].mxu0
        %812 = vmatprep.mubr.f32.mxu0 0.0
        %v813 = vand.u32 %v192, 4294901760
        %814 = vmatmul.mubr.f32.gmra.mrb[0].mxu0 %v813
        %v815 = vpop.f32.mrb[0].mxu0
        %v816 = vadd.f32 %v692, %v815
        %v817 = vpop.f32.mrb[0].mxu0
        %818 = vmatprep.mubr.f32.mxu0 0.0
        %v819 = vand.u32 %v195, 4294901760
        %820 = vmatmul.mubr.f32.gmra.mrb[0].mxu0 %v819
        %v821 = vpop.f32.mrb[0].mxu0
        %v822 = vadd.f32 %v700, %v821
        %v823 = vpop.f32.mrb[0].mxu0
        %824 = vmatprep.mubr.f32.mxu0 0.0
        %v825 = vand.u32 %v198, 4294901760
        %826 = vmatmul.mubr.f32.gmra.mrb[0].mxu0 %v825
        %v827 = vpop.f32.mrb[0].mxu0
        %v828 = vadd.f32 %v708, %v827
        %v829 = vpop.f32.mrb[0].mxu0
        %830 = vmatprep.mubr.f32.mxu0 0.0
        %v831 = vand.u32 %v201, 4294901760
        %832 = vmatmul.mubr.f32.gmra.mrb[0].mxu0 %v831
        %v833 = vpop.f32.mrb[0].mxu0
        %v834 = vadd.f32 %v716, %v833
        %v835 = vpop.f32.mrb[0].mxu0
        %836 = vmatprep.mubr.f32.mxu0 0.0
        %v837 = vand.u32 %v204, 4294901760
        %838 = vmatmul.mubr.f32.gmra.mrb[0].mxu0 %v837
        %v839 = vpop.f32.mrb[0].mxu0
        %v840 = vadd.f32 %v724, %v839
        %v841 = vpop.f32.mrb[0].mxu0
        %842 = vdwg.mxu0
        %843 = vmatprep.subr.mxu0 0.0
        %v844 = vand.u32 %v208, 4294901760
        %845 = vmatpush1.msra.mxu0 %v844
        %846 = vmatprep.subr.mxu0 0.0
        %847 = vmatpush1.msra.mxu0 0.0
        %848 = vmatprep.subr.mxu0 0.0
        %849 = vmatpush1.msra.mxu0 0.0
        %850 = vmatprep.subr.mxu0 0.0
        %851 = vmatpush1.msra.mxu0 0.0
        %852 = vmatprep.subr.mxu0 0.0
        %853 = vmatpush1.msra.mxu0 0.0
        %854 = vmatprep.subr.mxu0 0.0
        %855 = vmatpush1.msra.mxu0 0.0
        %856 = vmatprep.subr.mxu0 0.0
        %857 = vmatpush1.msra.mxu0 0.0
        %858 = vmatprep.subr.mxu0 0.0
        %859 = vmatpush1.msra.mxu0 0.0
        %860 = vmatprep.subr.mxu0 0.0
        %861 = vmatpush1.msra.mxu0 0.0
        %862 = vmatprep.subr.mxu0 0.0
        %863 = vmatpush1.msra.mxu0 0.0
        %864 = vmatprep.subr.mxu0 0.0
        %865 = vmatpush1.msra.mxu0 0.0
        %866 = vmatprep.subr.mxu0 0.0
        %867 = vmatpush1.msra.mxu0 0.0
        %868 = vmatprep.subr.mxu0 0.0
        %869 = vmatpush1.msra.mxu0 0.0
        %870 = vmatprep.subr.mxu0 0.0
        %871 = vmatpush1.msra.mxu0 0.0
        %872 = vmatprep.subr.mxu0 0.0
        %873 = vmatpush1.msra.mxu0 0.0
        %874 = vmatprep.subr.mxu0 0.0
        %875 = vmatpush1.msra.mxu0 0.0
        %876 = vmatprep.subr.mxu0 0.0
        %877 = vmatpush1.msra.mxu0 0.0
        %878 = vmatprep.subr.mxu0 0.0
        %879 = vmatpush1.msra.mxu0 0.0
        %880 = vmatprep.subr.mxu0 0.0
        %881 = vmatpush1.msra.mxu0 0.0
        %882 = vmatprep.subr.mxu0 0.0
        %883 = vmatpush1.msra.mxu0 0.0
        %884 = vmatprep.subr.mxu0 0.0
        %885 = vmatpush1.msra.mxu0 0.0
        %886 = vmatprep.subr.mxu0 0.0
        %887 = vmatpush1.msra.mxu0 0.0
        %888 = vmatprep.subr.mxu0 0.0
        %889 = vmatpush1.msra.mxu0 0.0
        %890 = vmatprep.subr.mxu0 0.0
        %891 = vmatpush1.msra.mxu0 0.0
        %892 = vmatprep.subr.mxu0 0.0
        %893 = vmatpush1.msra.mxu0 0.0
        %894 = vmatprep.subr.mxu0 0.0
        %895 = vmatpush1.msra.mxu0 0.0
        %896 = vmatprep.subr.mxu0 0.0
        %897 = vmatpush1.msra.mxu0 0.0
        %898 = vmatprep.subr.mxu0 0.0
        %899 = vmatpush1.msra.mxu0 0.0
        %900 = vmatprep.subr.mxu0 0.0
        %901 = vmatpush1.msra.mxu0 0.0
        %902 = vmatprep.subr.mxu0 0.0
        %903 = vmatpush1.msra.mxu0 0.0
        %904 = vmatprep.subr.mxu0 0.0
        %905 = vmatpush1.msra.mxu0 0.0
        %906 = vmatprep.subr.mxu0 0.0
        %907 = vmatpush1.msra.mxu0 0.0
        %908 = vmatprep.mubr.f32.mxu0 0.0
        %v909 = vand.u32 %v183, 4294901760
        %910 = vmatmul.mubr.f32.gmra.mrb[0].mxu0 %v909
        %v911 = vpop.f32.mrb[0].mxu0
        %v912 = vadd.f32 %v798, %v911
        %v913 = vpop.f32.mrb[0].mxu0
        %914 = vmatprep.mubr.f32.mxu0 0.0
        %v915 = vand.u32 %v186, 4294901760
        %916 = vmatmul.mubr.f32.gmra.mrb[0].mxu0 %v915
        %v917 = vpop.f32.mrb[0].mxu0
        %v918 = vadd.f32 %v804, %v917
        %v919 = vpop.f32.mrb[0].mxu0
        %920 = vmatprep.mubr.f32.mxu0 0.0
        %v921 = vand.u32 %v189, 4294901760
        %922 = vmatmul.mubr.f32.gmra.mrb[0].mxu0 %v921
        %v923 = vpop.f32.mrb[0].mxu0
        %v924 = vadd.f32 %v810, %v923
        %v925 = vpop.f32.mrb[0].mxu0
        %926 = vmatprep.mubr.f32.mxu0 0.0
        %v927 = vand.u32 %v192, 4294901760
        %928 = vmatmul.mubr.f32.gmra.mrb[0].mxu0 %v927
        %v929 = vpop.f32.mrb[0].mxu0
        %v930 = vadd.f32 %v816, %v929
        %v931 = vpop.f32.mrb[0].mxu0
        %932 = vmatprep.mubr.f32.mxu0 0.0
        %v933 = vand.u32 %v195, 4294901760
        %934 = vmatmul.mubr.f32.gmra.mrb[0].mxu0 %v933
        %v935 = vpop.f32.mrb[0].mxu0
        %v936 = vadd.f32 %v822, %v935
        %v937 = vpop.f32.mrb[0].mxu0
        %938 = vmatprep.mubr.f32.mxu0 0.0
        %v939 = vand.u32 %v198, 4294901760
        %940 = vmatmul.mubr.f32.gmra.mrb[0].mxu0 %v939
        %v941 = vpop.f32.mrb[0].mxu0
        %v942 = vadd.f32 %v828, %v941
        %v943 = vpop.f32.mrb[0].mxu0
        %944 = vmatprep.mubr.f32.mxu0 0.0
        %v945 = vand.u32 %v201, 4294901760
        %946 = vmatmul.mubr.f32.gmra.mrb[0].mxu0 %v945
        %v947 = vpop.f32.mrb[0].mxu0
        %v948 = vadd.f32 %v834, %v947
        %v949 = vpop.f32.mrb[0].mxu0
        %950 = vmatprep.mubr.f32.mxu0 0.0
        %v951 = vand.u32 %v204, 4294901760
        %952 = vmatmul.mubr.f32.gmra.mrb[0].mxu0 %v951
        %v953 = vpop.f32.mrb[0].mxu0
        %v954 = vadd.f32 %v840, %v953
        %v955 = vpop.f32.mrb[0].mxu0
        %956 = vdwg.mxu0
        %v957 = vld [vmem:[%s1] sm:$0x1]
        %v958 = vlaneseq
        %v959 = vshrl.u32 %v958, 7
        %v960 = vsub.s32 0, %v959
        %v961 = vrot.slane %v957, %v960
        %v962 = vmul.f32 %v912, %v961
        %v963 = vmul.f32 %v918, %v961
        %v964 = vmul.f32 %v924, %v961
        %v965 = vmul.f32 %v930, %v961
        %v966 = vmul.f32 %v936, %v961
        %v967 = vmul.f32 %v942, %v961
        %v968 = vmul.f32 %v948, %v961
        %v969 = vmul.f32 %v954, %v961
        %v970 = vld [vmem:[%s1 + $0x1] sm:$0x1]
        %v971 = vlaneseq
        %v972 = vshrl.u32 %v971, 7
        %v973 = vsub.s32 0, %v972
        %v974 = vrot.slane %v970, %v973
        %v975 = vadd.f32 %v962, %v974
        %v976 = vadd.f32 %v963, %v974
        %v977 = vadd.f32 %v964, %v974
        %v978 = vadd.f32 %v965, %v974
        %v979 = vadd.f32 %v966, %v974
        %v980 = vadd.f32 %v967, %v974
        %v981 = vadd.f32 %v968, %v974
        %v982 = vadd.f32 %v969, %v974
        %v983 = vand.u32 2147483647, %v975
        %vm984 = vcmp.le.f32.partialorder %v983, 0.7853982
        %vm985 = vcmp.lt.s32.totalorder %v975, 0
        %v986 = vand.u32 %v975, 2139095040
        %v987 = vshrl.u32 %v986, 23
        %v988 = vsub.s32 %v987, 127
        %v989 = vand.u32 2147483647, %v975
        %v990 = vand.u32 %v989, 8388607
        %v991 = vor.u32 %v990, 8388608
        %v992 = vsub.s32 0, %v991
        %v993 = vadd.s32 %v988, 1
        %vm994 = vcmp.gt.s32.totalorder %v993, 0
        %v995 = vsel %vm994, %v993, 0
        %v996 = vshrl.u32 %v995, 5
        %v997 = vand.u32 %v995, 31
        %v998 = vsub.s32 32, %v997
        %v999 = vshrl.u32 683565275, %v998
        %v1000 = vshll.u32 683565275, %v997
        %v1001 = vshrl.u32 2475754826, %v998
        %v1002 = vor.u32 %v1000, %v1001
        %v1003 = vshll.u32 2475754826, %v997
        %v1004 = vshrl.u32 2131351028, %v998
        %v1005 = vor.u32 %v1003, %v1004
        %v1006 = vshll.u32 2131351028, %v997
        %v1007 = vshrl.u32 2102212464, %v998
        %v1008 = vor.u32 %v1006, %v1007
        %v1009 = vshll.u32 2102212464, %v997
        %v1010 = vshrl.u32 920167782, %v998
        %v1011 = vor.u32 %v1009, %v1010
        %v1012 = vshll.u32 920167782, %v997
        %v1013 = vshrl.u32 1326507024, %v998
        %v1014 = vor.u32 %v1012, %v1013
        %vm1015 = vcmp.lt.s32.totalorder %v996, 1
        %vm1016 = vcmp.lt.s32.totalorder %v996, 2
        %vm1017 = vcmp.lt.s32.totalorder %v996, 3
        %vm1018 = vcmp.lt.s32.totalorder %v996, 4
        %v1019 = vsel %vm1015, %v999, %v1002
        %v1020 = vsel %vm1018, %v1008, 2102212464
        %v1021 = vsel %vm1017, %v1005, %v1020
        %v1022 = vsel %vm1016, %v1019, %v1021
        %v1023 = vsel %vm1015, %v1002, %v1005
        %v1024 = vsel %vm1018, %v1011, 920167782
        %v1025 = vsel %vm1017, %v1008, %v1024
        %v1026 = vsel %vm1016, %v1023, %v1025
        %v1027 = vsel %vm1015, %v1005, %v1008
        %v1028 = vsel %vm1018, %v1014, 1326507024
        %v1029 = vsel %vm1017, %v1011, %v1028
        %v1030 = vsel %vm1016, %v1027, %v1029
        %v1031 = vshll.u32 %v991, 8
        %v1032 = vmul.u32.u64.compose %v1031, %v1030
        %v1033 = vextract.low.u32 %v1032
        %v1034 = vextract.high.u32 %v1032
        %v1035 = vmul.u32.u64.compose %v1031, %v1026
        %v1036 = vextract.low.u32 %v1035
        %v1037 = vextract.high.u32 %v1035
        %v1038 = vmul.u32 %v1031, %v1022
        %v1039 = vadd.s32 %v1034, %v1036
        %vm1040 = vc.u32 %v1034, %v1036
        %v1041 = vadd.s32 %v1037, 1
        %v1042 = vsel %vm1040, %v1041, %v1037
        %v1043 = vadd.s32 %v1038, %v1042
        %v1044 = vadd.s32 %v1043, 536870912
        %v1045 = vshrl.u32 %v1044, 30
        %v1046 = vshll.u32 %v1045, 30
        %v1047 = vsub.s32 %v1043, %v1046
        %vm1048 = vcmp.lt.s32.totalorder %v1047, 0
        %v1049 = vsub.s32 0, %v1047
        %v1050 = vsel %vm1048, %v1049, %v1047
        %v1051 = vclz %v1050
        %v1052 = vsub.s32 %v1051, 2
        %vm1053 = vcmp.gt.s32.totalorder 0, %v1052
        %v1054 = vsel %vm1053, 0, %v1052
        %v1055 = vsub.s32 32, %v1054
        %v1056 = vshll.u32 %v1047, %v1054
        %v1057 = vshrl.u32 %v1039, %v1055
        %v1058 = vor.u32 %v1056, %v1057
        %v1059 = vsub.s32 4294967266, %v1054
        %v1060 = vadd.s32 %v1059, 127
        %v1061 = vshll.u32 %v1060, 23
        %v1062 = vor.u32 4788187, %v1061
        %v1063 = vand.u32 2147483647, %v1062
        %v1065 = vcvt.s32.f32 %v1058
        %v1066 = vmul.f32 %v1065, %v1063
        %v1067 = vxor.u32 %v1066, 2147483648
        %v1068 = vsel %vm985, %v1067, %v1066
        %v1069 = vsub.s32 4, %v1045
        %v1070 = vsel %vm985, %v1069, %v1045
        %v1071 = vsel %vm984, %v975, %v1068
        %v1072 = vsel %vm984, 0, %v1070
        %v1073 = vcosq.f32.pop %v1071
        %v1074 = vsinq.f32.pop %v1071
        %vm1075 = vweird.f32 %v975
        %v1076 = vadd.s32 %v1072, 3
        %v1077 = vand.u32 %v1076, 3
        %vm1078 = vcmp.lt.s32.totalorder %v1077, 2
        %vm1079 = vcmp.eq.s32.totalorder %v1077, 0
        %v1080 = vxor.u32 %v1074, 2147483648
        %v1081 = vsel %vm1079, %v1073, %v1080
        %vm1082 = vcmp.eq.s32.totalorder %v1077, 2
        %v1083 = vxor.u32 %v1073, 2147483648
        %v1084 = vsel %vm1082, %v1083, %v1074
        %v1085 = vsel %vm1078, %v1081, %v1084
        %v1086 = vsel %vm1075, nan, %v1085
        %v1087 = vand.u32 2147483647, %v976
        %vm1088 = vcmp.le.f32.partialorder %v1087, 0.7853982
        %vm1089 = vcmp.lt.s32.totalorder %v976, 0
        %v1090 = vand.u32 %v976, 2139095040
        %v1091 = vshrl.u32 %v1090, 23
        %v1092 = vsub.s32 %v1091, 127
        %v1093 = vand.u32 2147483647, %v976
        %v1094 = vand.u32 %v1093, 8388607
        %v1095 = vor.u32 %v1094, 8388608
        %v1096 = vsub.s32 0, %v1095
        %v1097 = vadd.s32 %v1092, 1
        %vm1098 = vcmp.gt.s32.totalorder %v1097, 0
        %v1099 = vsel %vm1098, %v1097, 0
        %v1100 = vshrl.u32 %v1099, 5
        %v1101 = vand.u32 %v1099, 31
        %v1102 = vsub.s32 32, %v1101
        %v1103 = vshrl.u32 683565275, %v1102
        %v1104 = vshll.u32 683565275, %v1101
        %v1105 = vshrl.u32 2475754826, %v1102
        %v1106 = vor.u32 %v1104, %v1105
        %v1107 = vshll.u32 2475754826, %v1101
        %v1108 = vshrl.u32 2131351028, %v1102
        %v1109 = vor.u32 %v1107, %v1108
        %v1110 = vshll.u32 2131351028, %v1101
        %v1111 = vshrl.u32 2102212464, %v1102
        %v1112 = vor.u32 %v1110, %v1111
        %v1113 = vshll.u32 2102212464, %v1101
        %v1114 = vshrl.u32 920167782, %v1102
        %v1115 = vor.u32 %v1113, %v1114
        %v1116 = vshll.u32 920167782, %v1101
        %v1117 = vshrl.u32 1326507024, %v1102
        %v1118 = vor.u32 %v1116, %v1117
        %vm1119 = vcmp.lt.s32.totalorder %v1100, 1
        %vm1120 = vcmp.lt.s32.totalorder %v1100, 2
        %vm1121 = vcmp.lt.s32.totalorder %v1100, 3
        %vm1122 = vcmp.lt.s32.totalorder %v1100, 4
        %v1123 = vsel %vm1119, %v1103, %v1106
        %v1124 = vsel %vm1122, %v1112, 2102212464
        %v1125 = vsel %vm1121, %v1109, %v1124
        %v1126 = vsel %vm1120, %v1123, %v1125
        %v1127 = vsel %vm1119, %v1106, %v1109
        %v1128 = vsel %vm1122, %v1115, 920167782
        %v1129 = vsel %vm1121, %v1112, %v1128
        %v1130 = vsel %vm1120, %v1127, %v1129
        %v1131 = vsel %vm1119, %v1109, %v1112
        %v1132 = vsel %vm1122, %v1118, 1326507024
        %v1133 = vsel %vm1121, %v1115, %v1132
        %v1134 = vsel %vm1120, %v1131, %v1133
        %v1135 = vshll.u32 %v1095, 8
        %v1136 = vmul.u32.u64.compose %v1135, %v1134
        %v1137 = vextract.low.u32 %v1136
        %v1138 = vextract.high.u32 %v1136
        %v1139 = vmul.u32.u64.compose %v1135, %v1130
        %v1140 = vextract.low.u32 %v1139
        %v1141 = vextract.high.u32 %v1139
        %v1142 = vmul.u32 %v1135, %v1126
        %v1143 = vadd.s32 %v1138, %v1140
        %vm1144 = vc.u32 %v1138, %v1140
        %v1145 = vadd.s32 %v1141, 1
        %v1146 = vsel %vm1144, %v1145, %v1141
        %v1147 = vadd.s32 %v1142, %v1146
        %v1148 = vadd.s32 %v1147, 536870912
        %v1149 = vshrl.u32 %v1148, 30
        %v1150 = vshll.u32 %v1149, 30
        %v1151 = vsub.s32 %v1147, %v1150
        %vm1152 = vcmp.lt.s32.totalorder %v1151, 0
        %v1153 = vsub.s32 0, %v1151
        %v1154 = vsel %vm1152, %v1153, %v1151
        %v1155 = vclz %v1154
        %v1156 = vsub.s32 %v1155, 2
        %vm1157 = vcmp.gt.s32.totalorder 0, %v1156
        %v1158 = vsel %vm1157, 0, %v1156
        %v1159 = vsub.s32 32, %v1158
        %v1160 = vshll.u32 %v1151, %v1158
        %v1161 = vshrl.u32 %v1143, %v1159
        %v1162 = vor.u32 %v1160, %v1161
        %v1163 = vsub.s32 4294967266, %v1158
        %v1164 = vadd.s32 %v1163, 127
        %v1165 = vshll.u32 %v1164, 23
        %v1166 = vor.u32 4788187, %v1165
        %v1167 = vand.u32 2147483647, %v1166
        %v1169 = vcvt.s32.f32 %v1162
        %v1170 = vmul.f32 %v1169, %v1167
        %v1171 = vxor.u32 %v1170, 2147483648
        %v1172 = vsel %vm1089, %v1171, %v1170
        %v1173 = vsub.s32 4, %v1149
        %v1174 = vsel %vm1089, %v1173, %v1149
        %v1175 = vsel %vm1088, %v976, %v1172
        %v1176 = vsel %vm1088, 0, %v1174
        %v1177 = vcosq.f32.pop %v1175
        %v1178 = vsinq.f32.pop %v1175
        %vm1179 = vweird.f32 %v976
        %v1180 = vadd.s32 %v1176, 3
        %v1181 = vand.u32 %v1180, 3
        %vm1182 = vcmp.lt.s32.totalorder %v1181, 2
        %vm1183 = vcmp.eq.s32.totalorder %v1181, 0
        %v1184 = vxor.u32 %v1178, 2147483648
        %v1185 = vsel %vm1183, %v1177, %v1184
        %vm1186 = vcmp.eq.s32.totalorder %v1181, 2
        %v1187 = vxor.u32 %v1177, 2147483648
        %v1188 = vsel %vm1186, %v1187, %v1178
        %v1189 = vsel %vm1182, %v1185, %v1188
        %v1190 = vsel %vm1179, nan, %v1189
        %v1191 = vand.u32 2147483647, %v977
        %vm1192 = vcmp.le.f32.partialorder %v1191, 0.7853982
        %vm1193 = vcmp.lt.s32.totalorder %v977, 0
        %v1194 = vand.u32 %v977, 2139095040
        %v1195 = vshrl.u32 %v1194, 23
        %v1196 = vsub.s32 %v1195, 127
        %v1197 = vand.u32 2147483647, %v977
        %v1198 = vand.u32 %v1197, 8388607
        %v1199 = vor.u32 %v1198, 8388608
        %v1200 = vsub.s32 0, %v1199
        %v1201 = vadd.s32 %v1196, 1
        %vm1202 = vcmp.gt.s32.totalorder %v1201, 0
        %v1203 = vsel %vm1202, %v1201, 0
        %v1204 = vshrl.u32 %v1203, 5
        %v1205 = vand.u32 %v1203, 31
        %v1206 = vsub.s32 32, %v1205
        %v1207 = vshrl.u32 683565275, %v1206
        %v1208 = vshll.u32 683565275, %v1205
        %v1209 = vshrl.u32 2475754826, %v1206
        %v1210 = vor.u32 %v1208, %v1209
        %v1211 = vshll.u32 2475754826, %v1205
        %v1212 = vshrl.u32 2131351028, %v1206
        %v1213 = vor.u32 %v1211, %v1212
        %v1214 = vshll.u32 2131351028, %v1205
        %v1215 = vshrl.u32 2102212464, %v1206
        %v1216 = vor.u32 %v1214, %v1215
        %v1217 = vshll.u32 2102212464, %v1205
        %v1218 = vshrl.u32 920167782, %v1206
        %v1219 = vor.u32 %v1217, %v1218
        %v1220 = vshll.u32 920167782, %v1205
        %v1221 = vshrl.u32 1326507024, %v1206
        %v1222 = vor.u32 %v1220, %v1221
        %vm1223 = vcmp.lt.s32.totalorder %v1204, 1
        %vm1224 = vcmp.lt.s32.totalorder %v1204, 2
        %vm1225 = vcmp.lt.s32.totalorder %v1204, 3
        %vm1226 = vcmp.lt.s32.totalorder %v1204, 4
        %v1227 = vsel %vm1223, %v1207, %v1210
        %v1228 = vsel %vm1226, %v1216, 2102212464
        %v1229 = vsel %vm1225, %v1213, %v1228
        %v1230 = vsel %vm1224, %v1227, %v1229
        %v1231 = vsel %vm1223, %v1210, %v1213
        %v1232 = vsel %vm1226, %v1219, 920167782
        %v1233 = vsel %vm1225, %v1216, %v1232
        %v1234 = vsel %vm1224, %v1231, %v1233
        %v1235 = vsel %vm1223, %v1213, %v1216
        %v1236 = vsel %vm1226, %v1222, 1326507024
        %v1237 = vsel %vm1225, %v1219, %v1236
        %v1238 = vsel %vm1224, %v1235, %v1237
        %v1239 = vshll.u32 %v1199, 8
        %v1240 = vmul.u32.u64.compose %v1239, %v1238
        %v1241 = vextract.low.u32 %v1240
        %v1242 = vextract.high.u32 %v1240
        %v1243 = vmul.u32.u64.compose %v1239, %v1234
        %v1244 = vextract.low.u32 %v1243
        %v1245 = vextract.high.u32 %v1243
        %v1246 = vmul.u32 %v1239, %v1230
        %v1247 = vadd.s32 %v1242, %v1244
        %vm1248 = vc.u32 %v1242, %v1244
        %v1249 = vadd.s32 %v1245, 1
        %v1250 = vsel %vm1248, %v1249, %v1245
        %v1251 = vadd.s32 %v1246, %v1250
        %v1252 = vadd.s32 %v1251, 536870912
        %v1253 = vshrl.u32 %v1252, 30
        %v1254 = vshll.u32 %v1253, 30
        %v1255 = vsub.s32 %v1251, %v1254
        %vm1256 = vcmp.lt.s32.totalorder %v1255, 0
        %v1257 = vsub.s32 0, %v1255
        %v1258 = vsel %vm1256, %v1257, %v1255
        %v1259 = vclz %v1258
        %v1260 = vsub.s32 %v1259, 2
        %vm1261 = vcmp.gt.s32.totalorder 0, %v1260
        %v1262 = vsel %vm1261, 0, %v1260
        %v1263 = vsub.s32 32, %v1262
        %v1264 = vshll.u32 %v1255, %v1262
        %v1265 = vshrl.u32 %v1247, %v1263
        %v1266 = vor.u32 %v1264, %v1265
        %v1267 = vsub.s32 4294967266, %v1262
        %v1268 = vadd.s32 %v1267, 127
        %v1269 = vshll.u32 %v1268, 23
        %v1270 = vor.u32 4788187, %v1269
        %v1271 = vand.u32 2147483647, %v1270
        %v1273 = vcvt.s32.f32 %v1266
        %v1274 = vmul.f32 %v1273, %v1271
        %v1275 = vxor.u32 %v1274, 2147483648
        %v1276 = vsel %vm1193, %v1275, %v1274
        %v1277 = vsub.s32 4, %v1253
        %v1278 = vsel %vm1193, %v1277, %v1253
        %v1279 = vsel %vm1192, %v977, %v1276
        %v1280 = vsel %vm1192, 0, %v1278
        %v1281 = vcosq.f32.pop %v1279
        %v1282 = vsinq.f32.pop %v1279
        %vm1283 = vweird.f32 %v977
        %v1284 = vadd.s32 %v1280, 3
        %v1285 = vand.u32 %v1284, 3
        %vm1286 = vcmp.lt.s32.totalorder %v1285, 2
        %vm1287 = vcmp.eq.s32.totalorder %v1285, 0
        %v1288 = vxor.u32 %v1282, 2147483648
        %v1289 = vsel %vm1287, %v1281, %v1288
        %vm1290 = vcmp.eq.s32.totalorder %v1285, 2
        %v1291 = vxor.u32 %v1281, 2147483648
        %v1292 = vsel %vm1290, %v1291, %v1282
        %v1293 = vsel %vm1286, %v1289, %v1292
        %v1294 = vsel %vm1283, nan, %v1293
        %v1295 = vand.u32 2147483647, %v978
        %vm1296 = vcmp.le.f32.partialorder %v1295, 0.7853982
        %vm1297 = vcmp.lt.s32.totalorder %v978, 0
        %v1298 = vand.u32 %v978, 2139095040
        %v1299 = vshrl.u32 %v1298, 23
        %v1300 = vsub.s32 %v1299, 127
        %v1301 = vand.u32 2147483647, %v978
        %v1302 = vand.u32 %v1301, 8388607
        %v1303 = vor.u32 %v1302, 8388608
        %v1304 = vsub.s32 0, %v1303
        %v1305 = vadd.s32 %v1300, 1
        %vm1306 = vcmp.gt.s32.totalorder %v1305, 0
        %v1307 = vsel %vm1306, %v1305, 0
        %v1308 = vshrl.u32 %v1307, 5
        %v1309 = vand.u32 %v1307, 31
        %v1310 = vsub.s32 32, %v1309
        %v1311 = vshrl.u32 683565275, %v1310
        %v1312 = vshll.u32 683565275, %v1309
        %v1313 = vshrl.u32 2475754826, %v1310
        %v1314 = vor.u32 %v1312, %v1313
        %v1315 = vshll.u32 2475754826, %v1309
        %v1316 = vshrl.u32 2131351028, %v1310
        %v1317 = vor.u32 %v1315, %v1316
        %v1318 = vshll.u32 2131351028, %v1309
        %v1319 = vshrl.u32 2102212464, %v1310
        %v1320 = vor.u32 %v1318, %v1319
        %v1321 = vshll.u32 2102212464, %v1309
        %v1322 = vshrl.u32 920167782, %v1310
        %v1323 = vor.u32 %v1321, %v1322
        %v1324 = vshll.u32 920167782, %v1309
        %v1325 = vshrl.u32 1326507024, %v1310
        %v1326 = vor.u32 %v1324, %v1325
        %vm1327 = vcmp.lt.s32.totalorder %v1308, 1
        %vm1328 = vcmp.lt.s32.totalorder %v1308, 2
        %vm1329 = vcmp.lt.s32.totalorder %v1308, 3
        %vm1330 = vcmp.lt.s32.totalorder %v1308, 4
        %v1331 = vsel %vm1327, %v1311, %v1314
        %v1332 = vsel %vm1330, %v1320, 2102212464
        %v1333 = vsel %vm1329, %v1317, %v1332
        %v1334 = vsel %vm1328, %v1331, %v1333
        %v1335 = vsel %vm1327, %v1314, %v1317
        %v1336 = vsel %vm1330, %v1323, 920167782
        %v1337 = vsel %vm1329, %v1320, %v1336
        %v1338 = vsel %vm1328, %v1335, %v1337
        %v1339 = vsel %vm1327, %v1317, %v1320
        %v1340 = vsel %vm1330, %v1326, 1326507024
        %v1341 = vsel %vm1329, %v1323, %v1340
        %v1342 = vsel %vm1328, %v1339, %v1341
        %v1343 = vshll.u32 %v1303, 8
        %v1344 = vmul.u32.u64.compose %v1343, %v1342
        %v1345 = vextract.low.u32 %v1344
        %v1346 = vextract.high.u32 %v1344
        %v1347 = vmul.u32.u64.compose %v1343, %v1338
        %v1348 = vextract.low.u32 %v1347
        %v1349 = vextract.high.u32 %v1347
        %v1350 = vmul.u32 %v1343, %v1334
        %v1351 = vadd.s32 %v1346, %v1348
        %vm1352 = vc.u32 %v1346, %v1348
        %v1353 = vadd.s32 %v1349, 1
        %v1354 = vsel %vm1352, %v1353, %v1349
        %v1355 = vadd.s32 %v1350, %v1354
        %v1356 = vadd.s32 %v1355, 536870912
        %v1357 = vshrl.u32 %v1356, 30
        %v1358 = vshll.u32 %v1357, 30
        %v1359 = vsub.s32 %v1355, %v1358
        %vm1360 = vcmp.lt.s32.totalorder %v1359, 0
        %v1361 = vsub.s32 0, %v1359
        %v1362 = vsel %vm1360, %v1361, %v1359
        %v1363 = vclz %v1362
        %v1364 = vsub.s32 %v1363, 2
        %vm1365 = vcmp.gt.s32.totalorder 0, %v1364
        %v1366 = vsel %vm1365, 0, %v1364
        %v1367 = vsub.s32 32, %v1366
        %v1368 = vshll.u32 %v1359, %v1366
        %v1369 = vshrl.u32 %v1351, %v1367
        %v1370 = vor.u32 %v1368, %v1369
        %v1371 = vsub.s32 4294967266, %v1366
        %v1372 = vadd.s32 %v1371, 127
        %v1373 = vshll.u32 %v1372, 23
        %v1374 = vor.u32 4788187, %v1373
        %v1375 = vand.u32 2147483647, %v1374
        %v1377 = vcvt.s32.f32 %v1370
        %v1378 = vmul.f32 %v1377, %v1375
        %v1379 = vxor.u32 %v1378, 2147483648
        %v1380 = vsel %vm1297, %v1379, %v1378
        %v1381 = vsub.s32 4, %v1357
        %v1382 = vsel %vm1297, %v1381, %v1357
        %v1383 = vsel %vm1296, %v978, %v1380
        %v1384 = vsel %vm1296, 0, %v1382
        %v1385 = vcosq.f32.pop %v1383
        %v1386 = vsinq.f32.pop %v1383
        %vm1387 = vweird.f32 %v978
        %v1388 = vadd.s32 %v1384, 3
        %v1389 = vand.u32 %v1388, 3
        %vm1390 = vcmp.lt.s32.totalorder %v1389, 2
        %vm1391 = vcmp.eq.s32.totalorder %v1389, 0
        %v1392 = vxor.u32 %v1386, 2147483648
        %v1393 = vsel %vm1391, %v1385, %v1392
        %vm1394 = vcmp.eq.s32.totalorder %v1389, 2
        %v1395 = vxor.u32 %v1385, 2147483648
        %v1396 = vsel %vm1394, %v1395, %v1386
        %v1397 = vsel %vm1390, %v1393, %v1396
        %v1398 = vsel %vm1387, nan, %v1397
        %v1399 = vand.u32 2147483647, %v979
        %vm1400 = vcmp.le.f32.partialorder %v1399, 0.7853982
        %vm1401 = vcmp.lt.s32.totalorder %v979, 0
        %v1402 = vand.u32 %v979, 2139095040
        %v1403 = vshrl.u32 %v1402, 23
        %v1404 = vsub.s32 %v1403, 127
        %v1405 = vand.u32 2147483647, %v979
        %v1406 = vand.u32 %v1405, 8388607
        %v1407 = vor.u32 %v1406, 8388608
        %v1408 = vsub.s32 0, %v1407
        %v1409 = vadd.s32 %v1404, 1
        %vm1410 = vcmp.gt.s32.totalorder %v1409, 0
        %v1411 = vsel %vm1410, %v1409, 0
        %v1412 = vshrl.u32 %v1411, 5
        %v1413 = vand.u32 %v1411, 31
        %v1414 = vsub.s32 32, %v1413
        %v1415 = vshrl.u32 683565275, %v1414
        %v1416 = vshll.u32 683565275, %v1413
        %v1417 = vshrl.u32 2475754826, %v1414
        %v1418 = vor.u32 %v1416, %v1417
        %v1419 = vshll.u32 2475754826, %v1413
        %v1420 = vshrl.u32 2131351028, %v1414
        %v1421 = vor.u32 %v1419, %v1420
        %v1422 = vshll.u32 2131351028, %v1413
        %v1423 = vshrl.u32 2102212464, %v1414
        %v1424 = vor.u32 %v1422, %v1423
        %v1425 = vshll.u32 2102212464, %v1413
        %v1426 = vshrl.u32 920167782, %v1414
        %v1427 = vor.u32 %v1425, %v1426
        %v1428 = vshll.u32 920167782, %v1413
        %v1429 = vshrl.u32 1326507024, %v1414
        %v1430 = vor.u32 %v1428, %v1429
        %vm1431 = vcmp.lt.s32.totalorder %v1412, 1
        %vm1432 = vcmp.lt.s32.totalorder %v1412, 2
        %vm1433 = vcmp.lt.s32.totalorder %v1412, 3
        %vm1434 = vcmp.lt.s32.totalorder %v1412, 4
        %v1435 = vsel %vm1431, %v1415, %v1418
        %v1436 = vsel %vm1434, %v1424, 2102212464
        %v1437 = vsel %vm1433, %v1421, %v1436
        %v1438 = vsel %vm1432, %v1435, %v1437
        %v1439 = vsel %vm1431, %v1418, %v1421
        %v1440 = vsel %vm1434, %v1427, 920167782
        %v1441 = vsel %vm1433, %v1424, %v1440
        %v1442 = vsel %vm1432, %v1439, %v1441
        %v1443 = vsel %vm1431, %v1421, %v1424
        %v1444 = vsel %vm1434, %v1430, 1326507024
        %v1445 = vsel %vm1433, %v1427, %v1444
        %v1446 = vsel %vm1432, %v1443, %v1445
        %v1447 = vshll.u32 %v1407, 8
        %v1448 = vmul.u32.u64.compose %v1447, %v1446
        %v1449 = vextract.low.u32 %v1448
        %v1450 = vextract.high.u32 %v1448
        %v1451 = vmul.u32.u64.compose %v1447, %v1442
        %v1452 = vextract.low.u32 %v1451
        %v1453 = vextract.high.u32 %v1451
        %v1454 = vmul.u32 %v1447, %v1438
        %v1455 = vadd.s32 %v1450, %v1452
        %vm1456 = vc.u32 %v1450, %v1452
        %v1457 = vadd.s32 %v1453, 1
        %v1458 = vsel %vm1456, %v1457, %v1453
        %v1459 = vadd.s32 %v1454, %v1458
        %v1460 = vadd.s32 %v1459, 536870912
        %v1461 = vshrl.u32 %v1460, 30
        %v1462 = vshll.u32 %v1461, 30
        %v1463 = vsub.s32 %v1459, %v1462
        %vm1464 = vcmp.lt.s32.totalorder %v1463, 0
        %v1465 = vsub.s32 0, %v1463
        %v1466 = vsel %vm1464, %v1465, %v1463
        %v1467 = vclz %v1466
        %v1468 = vsub.s32 %v1467, 2
        %vm1469 = vcmp.gt.s32.totalorder 0, %v1468
        %v1470 = vsel %vm1469, 0, %v1468
        %v1471 = vsub.s32 32, %v1470
        %v1472 = vshll.u32 %v1463, %v1470
        %v1473 = vshrl.u32 %v1455, %v1471
        %v1474 = vor.u32 %v1472, %v1473
        %v1475 = vsub.s32 4294967266, %v1470
        %v1476 = vadd.s32 %v1475, 127
        %v1477 = vshll.u32 %v1476, 23
        %v1478 = vor.u32 4788187, %v1477
        %v1479 = vand.u32 2147483647, %v1478
        %v1481 = vcvt.s32.f32 %v1474
        %v1482 = vmul.f32 %v1481, %v1479
        %v1483 = vxor.u32 %v1482, 2147483648
        %v1484 = vsel %vm1401, %v1483, %v1482
        %v1485 = vsub.s32 4, %v1461
        %v1486 = vsel %vm1401, %v1485, %v1461
        %v1487 = vsel %vm1400, %v979, %v1484
        %v1488 = vsel %vm1400, 0, %v1486
        %v1489 = vcosq.f32.pop %v1487
        %v1490 = vsinq.f32.pop %v1487
        %vm1491 = vweird.f32 %v979
        %v1492 = vadd.s32 %v1488, 3
        %v1493 = vand.u32 %v1492, 3
        %vm1494 = vcmp.lt.s32.totalorder %v1493, 2
        %vm1495 = vcmp.eq.s32.totalorder %v1493, 0
        %v1496 = vxor.u32 %v1490, 2147483648
        %v1497 = vsel %vm1495, %v1489, %v1496
        %vm1498 = vcmp.eq.s32.totalorder %v1493, 2
        %v1499 = vxor.u32 %v1489, 2147483648
        %v1500 = vsel %vm1498, %v1499, %v1490
        %v1501 = vsel %vm1494, %v1497, %v1500
        %v1502 = vsel %vm1491, nan, %v1501
        %v1503 = vand.u32 2147483647, %v980
        %vm1504 = vcmp.le.f32.partialorder %v1503, 0.7853982
        %vm1505 = vcmp.lt.s32.totalorder %v980, 0
        %v1506 = vand.u32 %v980, 2139095040
        %v1507 = vshrl.u32 %v1506, 23
        %v1508 = vsub.s32 %v1507, 127
        %v1509 = vand.u32 2147483647, %v980
        %v1510 = vand.u32 %v1509, 8388607
        %v1511 = vor.u32 %v1510, 8388608
        %v1512 = vsub.s32 0, %v1511
        %v1513 = vadd.s32 %v1508, 1
        %vm1514 = vcmp.gt.s32.totalorder %v1513, 0
        %v1515 = vsel %vm1514, %v1513, 0
        %v1516 = vshrl.u32 %v1515, 5
        %v1517 = vand.u32 %v1515, 31
        %v1518 = vsub.s32 32, %v1517
        %v1519 = vshrl.u32 683565275, %v1518
        %v1520 = vshll.u32 683565275, %v1517
        %v1521 = vshrl.u32 2475754826, %v1518
        %v1522 = vor.u32 %v1520, %v1521
        %v1523 = vshll.u32 2475754826, %v1517
        %v1524 = vshrl.u32 2131351028, %v1518
        %v1525 = vor.u32 %v1523, %v1524
        %v1526 = vshll.u32 2131351028, %v1517
        %v1527 = vshrl.u32 2102212464, %v1518
        %v1528 = vor.u32 %v1526, %v1527
        %v1529 = vshll.u32 2102212464, %v1517
        %v1530 = vshrl.u32 920167782, %v1518
        %v1531 = vor.u32 %v1529, %v1530
        %v1532 = vshll.u32 920167782, %v1517
        %v1533 = vshrl.u32 1326507024, %v1518
        %v1534 = vor.u32 %v1532, %v1533
        %vm1535 = vcmp.lt.s32.totalorder %v1516, 1
        %vm1536 = vcmp.lt.s32.totalorder %v1516, 2
        %vm1537 = vcmp.lt.s32.totalorder %v1516, 3
        %vm1538 = vcmp.lt.s32.totalorder %v1516, 4
        %v1539 = vsel %vm1535, %v1519, %v1522
        %v1540 = vsel %vm1538, %v1528, 2102212464
        %v1541 = vsel %vm1537, %v1525, %v1540
        %v1542 = vsel %vm1536, %v1539, %v1541
        %v1543 = vsel %vm1535, %v1522, %v1525
        %v1544 = vsel %vm1538, %v1531, 920167782
        %v1545 = vsel %vm1537, %v1528, %v1544
        %v1546 = vsel %vm1536, %v1543, %v1545
        %v1547 = vsel %vm1535, %v1525, %v1528
        %v1548 = vsel %vm1538, %v1534, 1326507024
        %v1549 = vsel %vm1537, %v1531, %v1548
        %v1550 = vsel %vm1536, %v1547, %v1549
        %v1551 = vshll.u32 %v1511, 8
        %v1552 = vmul.u32.u64.compose %v1551, %v1550
        %v1553 = vextract.low.u32 %v1552
        %v1554 = vextract.high.u32 %v1552
        %v1555 = vmul.u32.u64.compose %v1551, %v1546
        %v1556 = vextract.low.u32 %v1555
        %v1557 = vextract.high.u32 %v1555
        %v1558 = vmul.u32 %v1551, %v1542
        %v1559 = vadd.s32 %v1554, %v1556
        %vm1560 = vc.u32 %v1554, %v1556
        %v1561 = vadd.s32 %v1557, 1
        %v1562 = vsel %vm1560, %v1561, %v1557
        %v1563 = vadd.s32 %v1558, %v1562
        %v1564 = vadd.s32 %v1563, 536870912
        %v1565 = vshrl.u32 %v1564, 30
        %v1566 = vshll.u32 %v1565, 30
        %v1567 = vsub.s32 %v1563, %v1566
        %vm1568 = vcmp.lt.s32.totalorder %v1567, 0
        %v1569 = vsub.s32 0, %v1567
        %v1570 = vsel %vm1568, %v1569, %v1567
        %v1571 = vclz %v1570
        %v1572 = vsub.s32 %v1571, 2
        %vm1573 = vcmp.gt.s32.totalorder 0, %v1572
        %v1574 = vsel %vm1573, 0, %v1572
        %v1575 = vsub.s32 32, %v1574
        %v1576 = vshll.u32 %v1567, %v1574
        %v1577 = vshrl.u32 %v1559, %v1575
        %v1578 = vor.u32 %v1576, %v1577
        %v1579 = vsub.s32 4294967266, %v1574
        %v1580 = vadd.s32 %v1579, 127
        %v1581 = vshll.u32 %v1580, 23
        %v1582 = vor.u32 4788187, %v1581
        %v1583 = vand.u32 2147483647, %v1582
        %v1585 = vcvt.s32.f32 %v1578
        %v1586 = vmul.f32 %v1585, %v1583
        %v1587 = vxor.u32 %v1586, 2147483648
        %v1588 = vsel %vm1505, %v1587, %v1586
        %v1589 = vsub.s32 4, %v1565
        %v1590 = vsel %vm1505, %v1589, %v1565
        %v1591 = vsel %vm1504, %v980, %v1588
        %v1592 = vsel %vm1504, 0, %v1590
        %v1593 = vcosq.f32.pop %v1591
        %v1594 = vsinq.f32.pop %v1591
        %vm1595 = vweird.f32 %v980
        %v1596 = vadd.s32 %v1592, 3
        %v1597 = vand.u32 %v1596, 3
        %vm1598 = vcmp.lt.s32.totalorder %v1597, 2
        %vm1599 = vcmp.eq.s32.totalorder %v1597, 0
        %v1600 = vxor.u32 %v1594, 2147483648
        %v1601 = vsel %vm1599, %v1593, %v1600
        %vm1602 = vcmp.eq.s32.totalorder %v1597, 2
        %v1603 = vxor.u32 %v1593, 2147483648
        %v1604 = vsel %vm1602, %v1603, %v1594
        %v1605 = vsel %vm1598, %v1601, %v1604
        %v1606 = vsel %vm1595, nan, %v1605
        %v1607 = vand.u32 2147483647, %v981
        %vm1608 = vcmp.le.f32.partialorder %v1607, 0.7853982
        %vm1609 = vcmp.lt.s32.totalorder %v981, 0
        %v1610 = vand.u32 %v981, 2139095040
        %v1611 = vshrl.u32 %v1610, 23
        %v1612 = vsub.s32 %v1611, 127
        %v1613 = vand.u32 2147483647, %v981
        %v1614 = vand.u32 %v1613, 8388607
        %v1615 = vor.u32 %v1614, 8388608
        %v1616 = vsub.s32 0, %v1615
        %v1617 = vadd.s32 %v1612, 1
        %vm1618 = vcmp.gt.s32.totalorder %v1617, 0
        %v1619 = vsel %vm1618, %v1617, 0
        %v1620 = vshrl.u32 %v1619, 5
        %v1621 = vand.u32 %v1619, 31
        %v1622 = vsub.s32 32, %v1621
        %v1623 = vshrl.u32 683565275, %v1622
        %v1624 = vshll.u32 683565275, %v1621
        %v1625 = vshrl.u32 2475754826, %v1622
        %v1626 = vor.u32 %v1624, %v1625
        %v1627 = vshll.u32 2475754826, %v1621
        %v1628 = vshrl.u32 2131351028, %v1622
        %v1629 = vor.u32 %v1627, %v1628
        %v1630 = vshll.u32 2131351028, %v1621
        %v1631 = vshrl.u32 2102212464, %v1622
        %v1632 = vor.u32 %v1630, %v1631
        %v1633 = vshll.u32 2102212464, %v1621
        %v1634 = vshrl.u32 920167782, %v1622
        %v1635 = vor.u32 %v1633, %v1634
        %v1636 = vshll.u32 920167782, %v1621
        %v1637 = vshrl.u32 1326507024, %v1622
        %v1638 = vor.u32 %v1636, %v1637
        %vm1639 = vcmp.lt.s32.totalorder %v1620, 1
        %vm1640 = vcmp.lt.s32.totalorder %v1620, 2
        %vm1641 = vcmp.lt.s32.totalorder %v1620, 3
        %vm1642 = vcmp.lt.s32.totalorder %v1620, 4
        %v1643 = vsel %vm1639, %v1623, %v1626
        %v1644 = vsel %vm1642, %v1632, 2102212464
        %v1645 = vsel %vm1641, %v1629, %v1644
        %v1646 = vsel %vm1640, %v1643, %v1645
        %v1647 = vsel %vm1639, %v1626, %v1629
        %v1648 = vsel %vm1642, %v1635, 920167782
        %v1649 = vsel %vm1641, %v1632, %v1648
        %v1650 = vsel %vm1640, %v1647, %v1649
        %v1651 = vsel %vm1639, %v1629, %v1632
        %v1652 = vsel %vm1642, %v1638, 1326507024
        %v1653 = vsel %vm1641, %v1635, %v1652
        %v1654 = vsel %vm1640, %v1651, %v1653
        %v1655 = vshll.u32 %v1615, 8
        %v1656 = vmul.u32.u64.compose %v1655, %v1654
        %v1657 = vextract.low.u32 %v1656
        %v1658 = vextract.high.u32 %v1656
        %v1659 = vmul.u32.u64.compose %v1655, %v1650
        %v1660 = vextract.low.u32 %v1659
        %v1661 = vextract.high.u32 %v1659
        %v1662 = vmul.u32 %v1655, %v1646
        %v1663 = vadd.s32 %v1658, %v1660
        %vm1664 = vc.u32 %v1658, %v1660
        %v1665 = vadd.s32 %v1661, 1
        %v1666 = vsel %vm1664, %v1665, %v1661
        %v1667 = vadd.s32 %v1662, %v1666
        %v1668 = vadd.s32 %v1667, 536870912
        %v1669 = vshrl.u32 %v1668, 30
        %v1670 = vshll.u32 %v1669, 30
        %v1671 = vsub.s32 %v1667, %v1670
        %vm1672 = vcmp.lt.s32.totalorder %v1671, 0
        %v1673 = vsub.s32 0, %v1671
        %v1674 = vsel %vm1672, %v1673, %v1671
        %v1675 = vclz %v1674
        %v1676 = vsub.s32 %v1675, 2
        %vm1677 = vcmp.gt.s32.totalorder 0, %v1676
        %v1678 = vsel %vm1677, 0, %v1676
        %v1679 = vsub.s32 32, %v1678
        %v1680 = vshll.u32 %v1671, %v1678
        %v1681 = vshrl.u32 %v1663, %v1679
        %v1682 = vor.u32 %v1680, %v1681
        %v1683 = vsub.s32 4294967266, %v1678
        %v1684 = vadd.s32 %v1683, 127
        %v1685 = vshll.u32 %v1684, 23
        %v1686 = vor.u32 4788187, %v1685
        %v1687 = vand.u32 2147483647, %v1686
        %v1689 = vcvt.s32.f32 %v1682
        %v1690 = vmul.f32 %v1689, %v1687
        %v1691 = vxor.u32 %v1690, 2147483648
        %v1692 = vsel %vm1609, %v1691, %v1690
        %v1693 = vsub.s32 4, %v1669
        %v1694 = vsel %vm1609, %v1693, %v1669
        %v1695 = vsel %vm1608, %v981, %v1692
        %v1696 = vsel %vm1608, 0, %v1694
        %v1697 = vcosq.f32.pop %v1695
        %v1698 = vsinq.f32.pop %v1695
        %vm1699 = vweird.f32 %v981
        %v1700 = vadd.s32 %v1696, 3
        %v1701 = vand.u32 %v1700, 3
        %vm1702 = vcmp.lt.s32.totalorder %v1701, 2
        %vm1703 = vcmp.eq.s32.totalorder %v1701, 0
        %v1704 = vxor.u32 %v1698, 2147483648
        %v1705 = vsel %vm1703, %v1697, %v1704
        %vm1706 = vcmp.eq.s32.totalorder %v1701, 2
        %v1707 = vxor.u32 %v1697, 2147483648
        %v1708 = vsel %vm1706, %v1707, %v1698
        %v1709 = vsel %vm1702, %v1705, %v1708
        %v1710 = vsel %vm1699, nan, %v1709
        %v1711 = vand.u32 2147483647, %v982
        %vm1712 = vcmp.le.f32.partialorder %v1711, 0.7853982
        %vm1713 = vcmp.lt.s32.totalorder %v982, 0
        %v1714 = vand.u32 %v982, 2139095040
        %v1715 = vshrl.u32 %v1714, 23
        %v1716 = vsub.s32 %v1715, 127
        %v1717 = vand.u32 2147483647, %v982
        %v1718 = vand.u32 %v1717, 8388607
        %v1719 = vor.u32 %v1718, 8388608
        %v1720 = vsub.s32 0, %v1719
        %v1721 = vadd.s32 %v1716, 1
        %vm1722 = vcmp.gt.s32.totalorder %v1721, 0
        %v1723 = vsel %vm1722, %v1721, 0
        %v1724 = vshrl.u32 %v1723, 5
        %v1725 = vand.u32 %v1723, 31
        %v1726 = vsub.s32 32, %v1725
        %v1727 = vshrl.u32 683565275, %v1726
        %v1728 = vshll.u32 683565275, %v1725
        %v1729 = vshrl.u32 2475754826, %v1726
        %v1730 = vor.u32 %v1728, %v1729
        %v1731 = vshll.u32 2475754826, %v1725
        %v1732 = vshrl.u32 2131351028, %v1726
        %v1733 = vor.u32 %v1731, %v1732
        %v1734 = vshll.u32 2131351028, %v1725
        %v1735 = vshrl.u32 2102212464, %v1726
        %v1736 = vor.u32 %v1734, %v1735
        %v1737 = vshll.u32 2102212464, %v1725
        %v1738 = vshrl.u32 920167782, %v1726
        %v1739 = vor.u32 %v1737, %v1738
        %v1740 = vshll.u32 920167782, %v1725
        %v1741 = vshrl.u32 1326507024, %v1726
        %v1742 = vor.u32 %v1740, %v1741
        %vm1743 = vcmp.lt.s32.totalorder %v1724, 1
        %vm1744 = vcmp.lt.s32.totalorder %v1724, 2
        %vm1745 = vcmp.lt.s32.totalorder %v1724, 3
        %vm1746 = vcmp.lt.s32.totalorder %v1724, 4
        %v1747 = vsel %vm1743, %v1727, %v1730
        %v1748 = vsel %vm1746, %v1736, 2102212464
        %v1749 = vsel %vm1745, %v1733, %v1748
        %v1750 = vsel %vm1744, %v1747, %v1749
        %v1751 = vsel %vm1743, %v1730, %v1733
        %v1752 = vsel %vm1746, %v1739, 920167782
        %v1753 = vsel %vm1745, %v1736, %v1752
        %v1754 = vsel %vm1744, %v1751, %v1753
        %v1755 = vsel %vm1743, %v1733, %v1736
        %v1756 = vsel %vm1746, %v1742, 1326507024
        %v1757 = vsel %vm1745, %v1739, %v1756
        %v1758 = vsel %vm1744, %v1755, %v1757
        %v1759 = vshll.u32 %v1719, 8
        %v1760 = vmul.u32.u64.compose %v1759, %v1758
        %v1761 = vextract.low.u32 %v1760
        %v1762 = vextract.high.u32 %v1760
        %v1763 = vmul.u32.u64.compose %v1759, %v1754
        %v1764 = vextract.low.u32 %v1763
        %v1765 = vextract.high.u32 %v1763
        %v1766 = vmul.u32 %v1759, %v1750
        %v1767 = vadd.s32 %v1762, %v1764
        %vm1768 = vc.u32 %v1762, %v1764
        %v1769 = vadd.s32 %v1765, 1
        %v1770 = vsel %vm1768, %v1769, %v1765
        %v1771 = vadd.s32 %v1766, %v1770
        %v1772 = vadd.s32 %v1771, 536870912
        %v1773 = vshrl.u32 %v1772, 30
        %v1774 = vshll.u32 %v1773, 30
        %v1775 = vsub.s32 %v1771, %v1774
        %vm1776 = vcmp.lt.s32.totalorder %v1775, 0
        %v1777 = vsub.s32 0, %v1775
        %v1778 = vsel %vm1776, %v1777, %v1775
        %v1779 = vclz %v1778
        %v1780 = vsub.s32 %v1779, 2
        %vm1781 = vcmp.gt.s32.totalorder 0, %v1780
        %v1782 = vsel %vm1781, 0, %v1780
        %v1783 = vsub.s32 32, %v1782
        %v1784 = vshll.u32 %v1775, %v1782
        %v1785 = vshrl.u32 %v1767, %v1783
        %v1786 = vor.u32 %v1784, %v1785
        %v1787 = vsub.s32 4294967266, %v1782
        %v1788 = vadd.s32 %v1787, 127
        %v1789 = vshll.u32 %v1788, 23
        %v1790 = vor.u32 4788187, %v1789
        %v1791 = vand.u32 2147483647, %v1790
        %v1793 = vcvt.s32.f32 %v1786
        %v1794 = vmul.f32 %v1793, %v1791
        %v1795 = vxor.u32 %v1794, 2147483648
        %v1796 = vsel %vm1713, %v1795, %v1794
        %v1797 = vsub.s32 4, %v1773
        %v1798 = vsel %vm1713, %v1797, %v1773
        %v1799 = vsel %vm1712, %v982, %v1796
        %v1800 = vsel %vm1712, 0, %v1798
        %v1801 = vcosq.f32.pop %v1799
        %v1802 = vsinq.f32.pop %v1799
        %vm1803 = vweird.f32 %v982
        %v1804 = vadd.s32 %v1800, 3
        %v1805 = vand.u32 %v1804, 3
        %vm1806 = vcmp.lt.s32.totalorder %v1805, 2
        %vm1807 = vcmp.eq.s32.totalorder %v1805, 0
        %v1808 = vxor.u32 %v1802, 2147483648
        %v1809 = vsel %vm1807, %v1801, %v1808
        %vm1810 = vcmp.eq.s32.totalorder %v1805, 2
        %v1811 = vxor.u32 %v1801, 2147483648
        %v1812 = vsel %vm1810, %v1811, %v1802
        %v1813 = vsel %vm1806, %v1809, %v1812
        %v1814 = vsel %vm1803, nan, %v1813
        %1815 = vst [vmem:[%s164] sm:$0xff] %v1086
        %1816 = vst [vmem:[%s164 + $0x8] sm:$0xff] %v1190
        %1817 = vst [vmem:[%s164 + $0x10] sm:$0xff] %v1294
        %1818 = vst [vmem:[%s164 + $0x18] sm:$0xff] %v1398
        %1819 = vst [vmem:[%s164 + $0x20] sm:$0xff] %v1502
        %1820 = vst [vmem:[%s164 + $0x28] sm:$0xff] %v1606
        %1821 = vst [vmem:[%s164 + $0x30] sm:$0xff] %v1710
        %1822 = vst [vmem:[%s164 + $0x38] sm:$0xff] %v1814
        %s1823 = sand.u32 %s93, 1
        %s1824 = scalar_lea.sflag [#allocation3], %s1823
        %s1825 = sand.u32 %s93, 1
        %s1826 = smul.addr %s1825, 64
        %s1827 = scalar_lea.vmem [#allocation2], %s1826
        // Predicated region
        $region33: #{tpu_custom_call.1} parent=31 // pred_check
          %p1828 = pneg %p103
        $region34: #{tpu_custom_call.1} parent=31 // pred_check_branch
          %1830 = sbr.rel (%p1828) target = $region36
        $region35: #{tpu_custom_call.1} parent=31 // pred_region
          %s1831 = smul.u32 8, %s17
          %s1833 = ssub.s32 1024, 1024
          %1834 = vsyncadd %s1824, %s1833
          %s1835 = smul.addr %s1831, 128
          %s1836 = scalar_lea.hbm %s3, %s1835
          %s1837 = sshll.u32 %s1827, 4
          %s1838 = int_to_ptr.vmem [resolvable:$true] %s1837
          %1843 = dma.vmem_to_hbm [thread:$0]  %s1838, 1024, %s1836, %s1824, 128, 128, 8
        $region36: #{tpu_custom_call.1} parent=31 // pred_fallthru
          _
      $region32: #{tpu_custom_call.1} parent=5 // pred_fallthru
        _
      %p1844 = scmp.le.s32.totalorder 2, %s12
      // Predicated region
      $region37: #{tpu_custom_call.1} parent=5 // pred_check
        %p1845 = pneg %p1844
      $region38: #{tpu_custom_call.1} parent=5 // pred_check_branch
        %1847 = sbr.rel (%p1845) target = $region40
      $region39: #{tpu_custom_call.1} parent=5 // pred_region
        %s1848 = ssub.s32 %s12, 2
        // Predicated region
        $region41: #{tpu_custom_call.1} parent=39 // pred_check
          %p1849 = pneg %p109
        $region42: #{tpu_custom_call.1} parent=39 // pred_check_branch
          %1851 = sbr.rel (%p1849) target = $region44
        $region43: #{tpu_custom_call.1} parent=39 // pred_region
          %s1852 = sand.u32 %s94, 1
          %s1853 = scalar_lea.sflag [#allocation3], %s1852
          %s1854 = sand.u32 %s94, 1
          %s1855 = smul.addr %s1854, 64
          %s1856 = scalar_lea.vmem [#allocation2], %s1855
          %1857 = dma.done %s1853, 1024
        $region44: #{tpu_custom_call.1} parent=39 // pred_fallthru
          _
      $region40: #{tpu_custom_call.1} parent=5 // pred_fallthru
        _
    $region6: #{tpu_custom_call.1} parent=1 // loop_footer
      %s16 = sadd.s32 1, %s12
    $region7: #{tpu_custom_call.1} parent=1 // loop_footer_branch
      %11 = sbr.rel target = $region3
    $region8: #{tpu_custom_call.1} parent=1 // loop_exit
      _
    %1858 = vsyncpa [#allocation3], 1
    %s1859 = scalar_lea.sflag [#allocation3], 1
    %1860 = vsyncpa %s1859, 1

</llo_original>
